<compile_context>
chip_gen: v7x
topology: tpu7x:2x2x1
jax: 0.10.0
libtpu: 0.0.40
codegen_flags: <defaults>
</compile_context>

<pallas_src>
import jax
import jax.numpy as jnp
from jax import lax
from jax.experimental import pallas as pl
from jax.experimental.pallas import tpu as pltpu


def _prelu(x, a):
    # torch.nn.PReLU with a single scalar slope parameter.
    return jnp.where(x > 0, x, a * x)


def _round_up(x, m):
    return ((x + m - 1) // m) * m


def init_params(key):
    """Deterministic synthetic parameters (PyTorch shapes, pre-transposed to (in,out)).
    The two large conv weights are stored in bf16 (MXU-native); biases stay f32."""
    ks = jax.random.split(key, 6)

    def w(k, fan_in, fan_out, dtype=jnp.float32):
        return (jax.random.normal(k, (fan_in, fan_out), jnp.float32)
                * (1.0 / jnp.sqrt(fan_in))).astype(dtype)

    def b(k, n):
        return jax.random.normal(k, (1, n), jnp.float32) * 0.01

    return (
        w(ks[0], 6, 64), b(ks[1], 64),                       # Conv1d(6, 64, 1)
        w(ks[2], 64, 128, jnp.bfloat16), b(ks[3], 128),      # Conv1d(64, 128, 1)
        w(ks[4], 128, 1024, jnp.bfloat16), b(ks[5], 1024),   # Conv1d(128, 1024, 1)
        jnp.full((2,), 0.25, jnp.float32),                   # 2x PReLU (torch default)
    )


def pointfeat_forward(x, params, *, tile_n=2048, num_splits=1, chunk=256):
    """x: (B, 6, N) (PyTorch Conv1d layout). Mirrors PointFeatCNN.forward."""
    if x.ndim == 2:
        x = x[None]
    B, C, N = x.shape
    assert C == 6, "PointFeatCNN expects 6 input channels"
    x = x.astype(jnp.float32)

    w1, b1, w2, b2, w3, b3, pr = params
    w1t = jnp.transpose(w1)                                   # (64, 6), tiny
    weights = (w1t, b1, w2, b2, w3, b3)
    n_out = w3.shape[1]                                       # 1024
    assert n_out % chunk == 0 and chunk % 128 == 0

    # point tile: multiple of 128 lanes (x stays points-on-lanes in HBM layout)
    tile = min(_round_up(tile_n, 128), _round_up(N, 128))
    n_tiles = pl.cdiv(N, tile)
    tiles_per_split = pl.cdiv(n_tiles, num_splits)

    def kernel(x_ref, w1t_ref, b1_ref, w2_ref, b2_ref, w3_ref, b3_ref,
               pr_ref, out_ref):
        # x_ref block:   (1, 6, tile) f32 (native channels-first layout)
        # out_ref block: (1, 1, 1, 1024) f32, resident across the reduction axis
        s = pl.program_id(0)
        n = pl.program_id(2)

        @pl.when(n == 0)
        def _():
            out_ref[...] = jnp.full(out_ref.shape, -jnp.inf, out_ref.dtype)

        # Clamped global tile index: splits past the end re-read the last real
        # tile, which is harmless under a max reduction.
        t = jnp.minimum(s * tiles_per_split + n, n_tiles - 1)
        start = t * tile
        valid = (start + lax.broadcasted_iota(jnp.int32, (tile, 1), 0)) < N

        x_cf = x_ref[0]                                       # (6, tile) f32

        # Conv1d(6, 64, 1): channels-first matmul + one aligned XLU transpose,
        # then bias / PReLU in channels-last form (f32; K=6 -> keep f32).
        h = jnp.dot(w1t_ref[...], x_cf,
                    preferred_element_type=jnp.float32)       # (64, tile)
        h = jnp.transpose(h) + b1_ref[...]                    # (tile, 64)
        h = _prelu(h, pr_ref[0])

        # Conv1d(64, 128, 1) + PReLU (bf16 operands, f32 accumulation)
        h = jnp.dot(h.astype(jnp.bfloat16), w2_ref[...],
                    preferred_element_type=jnp.float32) + b2_ref[...]
        h = _prelu(h, pr_ref[1])                              # (tile, 128) f32
        h = h.astype(jnp.bfloat16)

        # Conv1d(128, 1024, 1): chunked over output channels, max folded per
        # chunk, invalid (tail) rows masked to -inf; b3 hoisted to finalize.
        for c in range(0, n_out, chunk):
            hc = jnp.dot(h, w3_ref[:, c:c + chunk],
                         preferred_element_type=jnp.float32)  # (tile, chunk)
            hc = jnp.where(valid, hc, -jnp.inf)
            cmax = jnp.max(hc, axis=0, keepdims=True)         # (1, chunk)
            out_ref[0, 0, :, c:c + chunk] = jnp.maximum(
                out_ref[0, 0, :, c:c + chunk], cmax)

        @pl.when(n == pl.num_programs(2) - 1)
        def _():
            # max_n(h) + b3 == max_n(h + b3) for a per-channel constant bias
            out_ref[0, 0] = out_ref[0, 0] + b3_ref[...]

    def x_map(s, b, n):
        return (b, 0, jnp.minimum(s * tiles_per_split + n, n_tiles - 1))

    def const_spec(arr):
        nd = arr.ndim
        return pl.BlockSpec(arr.shape, lambda s, b, n, _nd=nd: (0,) * _nd)

    in_specs = (
        [pl.BlockSpec((1, 6, tile), x_map)]                   # x, pipelined over n
        + [const_spec(a) for a in weights]                    # resident weights
        + [pl.BlockSpec(memory_space=pltpu.MemorySpace.SMEM)]  # PReLU slopes
    )
    out_specs = pl.BlockSpec((1, 1, 1, n_out), lambda s, b, n: (s, b, 0, 0))

    flops = 2 * B * N * (6 * 64 + 64 * 128 + 128 * n_out)
    bytes_accessed = (int(x.size) * 4
                      + sum(int(a.size) * a.dtype.itemsize for a in weights)
                      + num_splits * B * n_out * 4)

    out = pl.pallas_call(
        kernel,
        out_shape=jax.ShapeDtypeStruct((num_splits, B, 1, n_out), jnp.float32),
        grid=(num_splits, B, tiles_per_split),
        in_specs=in_specs,
        out_specs=out_specs,
        compiler_params=pltpu.CompilerParams(
            dimension_semantics=("parallel", "parallel", "arbitrary"),
            vmem_limit_bytes=32 * 1024 * 1024,                # fits v7x's 64 MiB VMEM
        ),
        cost_estimate=pl.CostEstimate(
            flops=flops, transcendentals=0, bytes_accessed=bytes_accessed),
    )(x, *weights, pr)

    feat = jnp.max(out[:, :, 0, :], axis=0)                   # combine splits -> (B, 1024)
    # torch: AdaptiveMaxPool1d(1) gives (B,1024,1); .squeeze() also drops B if B==1
    if B == 1:
        feat = feat[0]
    return feat


def pointfeat_reference(x, params):
    """Pure-JAX f32 reference mirroring the PyTorch forward."""
    if x.ndim == 2:
        x = x[None]
    w1, b1, w2, b2, w3, b3, pr = params
    x_cl = jnp.transpose(x, (0, 2, 1)).astype(jnp.float32)    # (B, N, 6)
    h = _prelu(x_cl @ w1 + b1, pr[0])
    h = _prelu(h @ w2.astype(jnp.float32) + b2, pr[1])
    h = h @ w3.astype(jnp.float32) + b3
    return jnp.max(h, axis=1)                                 # (B, 1024)


if __name__ == "__main__":
    B, N = 2, 16
    key = jax.random.PRNGKey(0)
    k_x, k_p = jax.random.split(key)

    x = jax.random.normal(k_x, (B, 6, N), jnp.float32)        # (batch, 6 channels, points)
    params = init_params(k_p)

    out = jax.block_until_ready(pointfeat_forward(x, params))
    ref = pointfeat_reference(x, params)
    assert out.shape == (B, 1024), out.shape
    # relaxed tolerance: layers 2/3 use bf16 MXU operands (f32 accumulation)
    assert jnp.allclose(out, ref, rtol=3e-2, atol=3e-2), \
        f"mismatch vs reference, max abs err {float(jnp.max(jnp.abs(out - ref)))}"

    # split-reduction path (v7x two-TensorCore case)
    out2 = jax.block_until_ready(pointfeat_forward(x, params, num_splits=2))
    assert jnp.allclose(out2, ref, rtol=3e-2, atol=3e-2)

    # ragged tail + multi-tile + B==1 squeeze path
    x3 = jax.random.normal(jax.random.PRNGKey(1), (1, 6, 300), jnp.float32)
    out3 = jax.block_until_ready(pointfeat_forward(x3, params, tile_n=128))
    ref3 = pointfeat_reference(x3, params)
    assert out3.shape == (1024,), out3.shape
    assert jnp.allclose(out3, ref3[0], rtol=3e-2, atol=3e-2)

    print("KERNEL_OK")
</pallas_src>

<mosaic_0001>
module attributes {stable_mosaic.version = 11 : i64} {
  func.func @kernel(%arg0: i32, %arg1: i32, %arg2: i32, %arg3: memref<1x6x128xf32, #tpu.memory_space<vmem>>, %arg4: memref<64x6xf32, #tpu.memory_space<vmem>>, %arg5: memref<1x64xf32, #tpu.memory_space<vmem>>, %arg6: memref<64x128xbf16, #tpu.memory_space<vmem>>, %arg7: memref<1x128xf32, #tpu.memory_space<vmem>>, %arg8: memref<128x1024xbf16, #tpu.memory_space<vmem>>, %arg9: memref<1x1024xf32, #tpu.memory_space<vmem>>, %arg10: memref<2xf32, #tpu.memory_space<smem>>, %arg11: memref<1x1x1x1024xf32, #tpu.memory_space<vmem>>) attributes {dimension_semantics = [#tpu.dimension_semantics<parallel>, #tpu.dimension_semantics<parallel>, #tpu.dimension_semantics<arbitrary>], iteration_bounds = array<i64: 1, 2, 1>, scalar_prefetch = 0 : i64, scratch_operands = 0 : i64, tpu.core_type = #tpu.core_type<tc>, window_params = [{transform_indices = @transform_0, window_bounds = array<i64: 1, 6, 128>}, {pipeline_mode = #tpu.pipeline_mode<synchronous>, transform_indices = @transform_1, window_bounds = array<i64: 64, 6>}, {pipeline_mode = #tpu.pipeline_mode<synchronous>, transform_indices = @transform_2, window_bounds = array<i64: 1, 64>}, {pipeline_mode = #tpu.pipeline_mode<synchronous>, transform_indices = @transform_3, window_bounds = array<i64: 64, 128>}, {pipeline_mode = #tpu.pipeline_mode<synchronous>, transform_indices = @transform_4, window_bounds = array<i64: 1, 128>}, {pipeline_mode = #tpu.pipeline_mode<synchronous>, transform_indices = @transform_5, window_bounds = array<i64: 128, 1024>}, {pipeline_mode = #tpu.pipeline_mode<synchronous>, transform_indices = @transform_6, window_bounds = array<i64: 1, 1024>}, {transform_indices = @transform_7, window_bounds = array<i64: 2>}, {transform_indices = @transform_8, window_bounds = array<i64: 1, 1, 1, 1024>}]} {
    %c0_i32 = arith.constant 0 : i32
    %0 = arith.cmpi eq, %arg2, %c0_i32 : i32
    %1 = arith.extui %0 : i1 to i32
    %c0_i32_0 = arith.constant 0 : i32
    %2 = arith.cmpi ne, %1, %c0_i32_0 : i32
    scf.if %2 {
      %cst_67 = arith.constant 0xFF800000 : f32
      %98 = vector.broadcast %cst_67 : f32 to vector<1x1x1x1024xf32>
      %c0_68 = arith.constant 0 : index
      %c0_69 = arith.constant 0 : index
      %c0_70 = arith.constant 0 : index
      %c0_71 = arith.constant 0 : index
      %99 = vector.load %arg11[%c0_68, %c0_69, %c0_70, %c0_71] : memref<1x1x1x1024xf32, #tpu.memory_space<vmem>>, vector<1x1x1x1024xf32>
      tpu.vector_store %arg11[%c0_68, %c0_69, %c0_70, %c0_71], %98 {strides = array<i32>} : memref<1x1x1x1024xf32, #tpu.memory_space<vmem>>, vector<1x1x1x1024xf32>,
    } else {
    }
    %c1_i32 = arith.constant 1 : i32
    %3 = arith.muli %arg0, %c1_i32 : i32
    %4 = arith.addi %3, %arg2 : i32
    %c0_i32_1 = arith.constant 0 : i32
    %5 = arith.minsi %4, %c0_i32_1 : i32
    %c128_i32 = arith.constant 128 : i32
    %6 = arith.muli %5, %c128_i32 : i32
    %7 = tpu.iota {dimensions = array<i32: 0>} : vector<128x1xi32>
    %8 = vector.broadcast %6 : i32 to vector<128x1xi32>
    %9 = arith.addi %8, %7 : vector<128x1xi32>
    %c16_i32 = arith.constant 16 : i32
    %10 = vector.broadcast %c16_i32 : i32 to vector<128x1xi32>
    %11 = arith.cmpi slt, %9, %10 : vector<128x1xi32>
    %c0 = arith.constant 0 : index
    %c0_2 = arith.constant 0 : index
    %c0_3 = arith.constant 0 : index
    %12 = vector.load %arg3[%c0, %c0_2, %c0_3] : memref<1x6x128xf32, #tpu.memory_space<vmem>>, vector<1x6x128xf32>
    %13 = vector.shape_cast %12 : vector<1x6x128xf32> to vector<6x128xf32>
    %c0_4 = arith.constant 0 : index
    %c0_5 = arith.constant 0 : index
    %14 = vector.load %arg4[%c0_4, %c0_5] : memref<64x6xf32, #tpu.memory_space<vmem>>, vector<64x6xf32>
    %cst = arith.constant dense<0.000000e+00> : vector<64x128xf32>
    %15 = tpu.matmul %14, %13, %cst {dimension_numbers = #tpu.dot_dimension_numbers<[1], [0], [0], [1], [0, 0, 1, 1], [], []>} : vector<64x6xf32>, vector<6x128xf32>, vector<64x128xf32> -> vector<64x128xf32>
    %16 = tpu.transpose %15, [1, 0] : vector<64x128xf32> -> vector<128x64xf32>
    %c0_6 = arith.constant 0 : index
    %c0_7 = arith.constant 0 : index
    %17 = vector.load %arg5[%c0_6, %c0_7] : memref<1x64xf32, #tpu.memory_space<vmem>>, vector<1x64xf32>
    %18 = vector.broadcast %17 : vector<1x64xf32> to vector<128x64xf32>
    %19 = arith.addf %16, %18 : vector<128x64xf32>
    %c0_8 = arith.constant 0 : index
    %20 = memref.load %arg10[%c0_8] : memref<2xf32, #tpu.memory_space<smem>>
    %cst_9 = arith.constant 0.000000e+00 : f32
    %21 = vector.broadcast %cst_9 : f32 to vector<128x64xf32>
    %22 = arith.cmpf ogt, %19, %21 : vector<128x64xf32>
    %23 = vector.broadcast %20 : f32 to vector<128x64xf32>
    %24 = arith.mulf %23, %19 : vector<128x64xf32>
    %25 = arith.select %22, %19, %24 : vector<128x64xi1>, vector<128x64xf32>
    %26 = arith.truncf %25 : vector<128x64xf32> to vector<128x64xbf16>
    %c0_10 = arith.constant 0 : index
    %c0_11 = arith.constant 0 : index
    %27 = vector.load %arg6[%c0_10, %c0_11] : memref<64x128xbf16, #tpu.memory_space<vmem>>, vector<64x128xbf16>
    %cst_12 = arith.constant dense<0.000000e+00> : vector<128x128xf32>
    %28 = tpu.matmul %26, %27, %cst_12 {dimension_numbers = #tpu.dot_dimension_numbers<[1], [0], [0], [1], [0, 0, 1, 1], [], []>} : vector<128x64xbf16>, vector<64x128xbf16>, vector<128x128xf32> -> vector<128x128xf32>
    %c0_13 = arith.constant 0 : index
    %c0_14 = arith.constant 0 : index
    %29 = vector.load %arg7[%c0_13, %c0_14] : memref<1x128xf32, #tpu.memory_space<vmem>>, vector<1x128xf32>
    %30 = vector.broadcast %29 : vector<1x128xf32> to vector<128x128xf32>
    %31 = arith.addf %28, %30 : vector<128x128xf32>
    %c1 = arith.constant 1 : index
    %32 = memref.load %arg10[%c1] : memref<2xf32, #tpu.memory_space<smem>>
    %cst_15 = arith.constant 0.000000e+00 : f32
    %33 = vector.broadcast %cst_15 : f32 to vector<128x128xf32>
    %34 = arith.cmpf ogt, %31, %33 : vector<128x128xf32>
    %35 = vector.broadcast %32 : f32 to vector<128x128xf32>
    %36 = arith.mulf %35, %31 : vector<128x128xf32>
    %37 = arith.select %34, %31, %36 : vector<128x128xi1>, vector<128x128xf32>
    %38 = arith.truncf %37 : vector<128x128xf32> to vector<128x128xbf16>
    %c0_16 = arith.constant 0 : index
    %c0_17 = arith.constant 0 : index
    %39 = vector.load %arg8[%c0_16, %c0_17] : memref<128x1024xbf16, #tpu.memory_space<vmem>>, vector<128x256xbf16>
    %cst_18 = arith.constant dense<0.000000e+00> : vector<128x256xf32>
    %40 = tpu.matmul %38, %39, %cst_18 {dimension_numbers = #tpu.dot_dimension_numbers<[1], [0], [0], [1], [0, 0, 1, 1], [], []>} : vector<128x128xbf16>, vector<128x256xbf16>, vector<128x256xf32> -> vector<128x256xf32>
    %cst_19 = arith.constant 0xFF800000 : f32
    %41 = vector.shape_cast %11 : vector<128x1xi1> to vector<128x1xi1>
    %42 = vector.broadcast %41 : vector<128x1xi1> to vector<128x256xi1>
    %43 = vector.broadcast %cst_19 : f32 to vector<128x256xf32>
    %44 = arith.select %42, %40, %43 : vector<128x256xi1>, vector<128x256xf32>
    %cst_20 = arith.constant dense<0xFF800000> : vector<256xf32>
    %45 = vector.multi_reduction <maximumf>, %44, %cst_20 [0] : vector<128x256xf32> to vector<256xf32>
    %46 = vector.shape_cast %45 : vector<256xf32> to vector<1x256xf32>
    %c0_21 = arith.constant 0 : index
    %c0_22 = arith.constant 0 : index
    %c0_23 = arith.constant 0 : index
    %c0_24 = arith.constant 0 : index
    %47 = vector.load %arg11[%c0_21, %c0_22, %c0_23, %c0_24] : memref<1x1x1x1024xf32, #tpu.memory_space<vmem>>, vector<1x1x1x256xf32>
    %48 = vector.shape_cast %47 : vector<1x1x1x256xf32> to vector<1x256xf32>
    %49 = arith.maximumf %48, %46 : vector<1x256xf32>
    %c0_25 = arith.constant 0 : index
    %c0_26 = arith.constant 0 : index
    %c0_27 = arith.constant 0 : index
    %c0_28 = arith.constant 0 : index
    %50 = vector.load %arg11[%c0_25, %c0_26, %c0_27, %c0_28] : memref<1x1x1x1024xf32, #tpu.memory_space<vmem>>, vector<1x1x1x256xf32>
    %51 = vector.shape_cast %50 : vector<1x1x1x256xf32> to vector<1x256xf32>
    %52 = vector.shape_cast %49 : vector<1x256xf32> to vector<1x1x1x256xf32>
    tpu.vector_store %arg11[%c0_25, %c0_26, %c0_27, %c0_28], %52 {strides = array<i32>} : memref<1x1x1x1024xf32, #tpu.memory_space<vmem>>, vector<1x1x1x256xf32>,
    %c0_29 = arith.constant 0 : index
    %c256 = arith.constant 256 : index
    %53 = vector.load %arg8[%c0_29, %c256] : memref<128x1024xbf16, #tpu.memory_space<vmem>>, vector<128x256xbf16>
    %cst_30 = arith.constant dense<0.000000e+00> : vector<128x256xf32>
    %54 = tpu.matmul %38, %53, %cst_30 {dimension_numbers = #tpu.dot_dimension_numbers<[1], [0], [0], [1], [0, 0, 1, 1], [], []>} : vector<128x128xbf16>, vector<128x256xbf16>, vector<128x256xf32> -> vector<128x256xf32>
    %cst_31 = arith.constant 0xFF800000 : f32
    %55 = vector.shape_cast %11 : vector<128x1xi1> to vector<128x1xi1>
    %56 = vector.broadcast %55 : vector<128x1xi1> to vector<128x256xi1>
    %57 = vector.broadcast %cst_31 : f32 to vector<128x256xf32>
    %58 = arith.select %56, %54, %57 : vector<128x256xi1>, vector<128x256xf32>
    %cst_32 = arith.constant dense<0xFF800000> : vector<256xf32>
    %59 = vector.multi_reduction <maximumf>, %58, %cst_32 [0] : vector<128x256xf32> to vector<256xf32>
    %60 = vector.shape_cast %59 : vector<256xf32> to vector<1x256xf32>
    %c0_33 = arith.constant 0 : index
    %c0_34 = arith.constant 0 : index
    %c0_35 = arith.constant 0 : index
    %c256_36 = arith.constant 256 : index
    %61 = vector.load %arg11[%c0_33, %c0_34, %c0_35, %c256_36] : memref<1x1x1x1024xf32, #tpu.memory_space<vmem>>, vector<1x1x1x256xf32>
    %62 = vector.shape_cast %61 : vector<1x1x1x256xf32> to vector<1x256xf32>
    %63 = arith.maximumf %62, %60 : vector<1x256xf32>
    %c0_37 = arith.constant 0 : index
    %c0_38 = arith.constant 0 : index
    %c0_39 = arith.constant 0 : index
    %c256_40 = arith.constant 256 : index
    %64 = vector.load %arg11[%c0_37, %c0_38, %c0_39, %c256_40] : memref<1x1x1x1024xf32, #tpu.memory_space<vmem>>, vector<1x1x1x256xf32>
    %65 = vector.shape_cast %64 : vector<1x1x1x256xf32> to vector<1x256xf32>
    %66 = vector.shape_cast %63 : vector<1x256xf32> to vector<1x1x1x256xf32>
    tpu.vector_store %arg11[%c0_37, %c0_38, %c0_39, %c256_40], %66 {strides = array<i32>} : memref<1x1x1x1024xf32, #tpu.memory_space<vmem>>, vector<1x1x1x256xf32>,
    %c0_41 = arith.constant 0 : index
    %c512 = arith.constant 512 : index
    %67 = vector.load %arg8[%c0_41, %c512] : memref<128x1024xbf16, #tpu.memory_space<vmem>>, vector<128x256xbf16>
    %cst_42 = arith.constant dense<0.000000e+00> : vector<128x256xf32>
    %68 = tpu.matmul %38, %67, %cst_42 {dimension_numbers = #tpu.dot_dimension_numbers<[1], [0], [0], [1], [0, 0, 1, 1], [], []>} : vector<128x128xbf16>, vector<128x256xbf16>, vector<128x256xf32> -> vector<128x256xf32>
    %cst_43 = arith.constant 0xFF800000 : f32
    %69 = vector.shape_cast %11 : vector<128x1xi1> to vector<128x1xi1>
    %70 = vector.broadcast %69 : vector<128x1xi1> to vector<128x256xi1>
    %71 = vector.broadcast %cst_43 : f32 to vector<128x256xf32>
    %72 = arith.select %70, %68, %71 : vector<128x256xi1>, vector<128x256xf32>
    %cst_44 = arith.constant dense<0xFF800000> : vector<256xf32>
    %73 = vector.multi_reduction <maximumf>, %72, %cst_44 [0] : vector<128x256xf32> to vector<256xf32>
    %74 = vector.shape_cast %73 : vector<256xf32> to vector<1x256xf32>
    %c0_45 = arith.constant 0 : index
    %c0_46 = arith.constant 0 : index
    %c0_47 = arith.constant 0 : index
    %c512_48 = arith.constant 512 : index
    %75 = vector.load %arg11[%c0_45, %c0_46, %c0_47, %c512_48] : memref<1x1x1x1024xf32, #tpu.memory_space<vmem>>, vector<1x1x1x256xf32>
    %76 = vector.shape_cast %75 : vector<1x1x1x256xf32> to vector<1x256xf32>
    %77 = arith.maximumf %76, %74 : vector<1x256xf32>
    %c0_49 = arith.constant 0 : index
    %c0_50 = arith.constant 0 : index
    %c0_51 = arith.constant 0 : index
    %c512_52 = arith.constant 512 : index
    %78 = vector.load %arg11[%c0_49, %c0_50, %c0_51, %c512_52] : memref<1x1x1x1024xf32, #tpu.memory_space<vmem>>, vector<1x1x1x256xf32>
    %79 = vector.shape_cast %78 : vector<1x1x1x256xf32> to vector<1x256xf32>
    %80 = vector.shape_cast %77 : vector<1x256xf32> to vector<1x1x1x256xf32>
    tpu.vector_store %arg11[%c0_49, %c0_50, %c0_51, %c512_52], %80 {strides = array<i32>} : memref<1x1x1x1024xf32, #tpu.memory_space<vmem>>, vector<1x1x1x256xf32>,
    %c0_53 = arith.constant 0 : index
    %c768 = arith.constant 768 : index
    %81 = vector.load %arg8[%c0_53, %c768] : memref<128x1024xbf16, #tpu.memory_space<vmem>>, vector<128x256xbf16>
    %cst_54 = arith.constant dense<0.000000e+00> : vector<128x256xf32>
    %82 = tpu.matmul %38, %81, %cst_54 {dimension_numbers = #tpu.dot_dimension_numbers<[1], [0], [0], [1], [0, 0, 1, 1], [], []>} : vector<128x128xbf16>, vector<128x256xbf16>, vector<128x256xf32> -> vector<128x256xf32>
    %cst_55 = arith.constant 0xFF800000 : f32
    %83 = vector.shape_cast %11 : vector<128x1xi1> to vector<128x1xi1>
    %84 = vector.broadcast %83 : vector<128x1xi1> to vector<128x256xi1>
    %85 = vector.broadcast %cst_55 : f32 to vector<128x256xf32>
    %86 = arith.select %84, %82, %85 : vector<128x256xi1>, vector<128x256xf32>
    %cst_56 = arith.constant dense<0xFF800000> : vector<256xf32>
    %87 = vector.multi_reduction <maximumf>, %86, %cst_56 [0] : vector<128x256xf32> to vector<256xf32>
    %88 = vector.shape_cast %87 : vector<256xf32> to vector<1x256xf32>
    %c0_57 = arith.constant 0 : index
    %c0_58 = arith.constant 0 : index
    %c0_59 = arith.constant 0 : index
    %c768_60 = arith.constant 768 : index
    %89 = vector.load %arg11[%c0_57, %c0_58, %c0_59, %c768_60] : memref<1x1x1x1024xf32, #tpu.memory_space<vmem>>, vector<1x1x1x256xf32>
    %90 = vector.shape_cast %89 : vector<1x1x1x256xf32> to vector<1x256xf32>
    %91 = arith.maximumf %90, %88 : vector<1x256xf32>
    %c0_61 = arith.constant 0 : index
    %c0_62 = arith.constant 0 : index
    %c0_63 = arith.constant 0 : index
    %c768_64 = arith.constant 768 : index
    %92 = vector.load %arg11[%c0_61, %c0_62, %c0_63, %c768_64] : memref<1x1x1x1024xf32, #tpu.memory_space<vmem>>, vector<1x1x1x256xf32>
    %93 = vector.shape_cast %92 : vector<1x1x1x256xf32> to vector<1x256xf32>
    %94 = vector.shape_cast %91 : vector<1x256xf32> to vector<1x1x1x256xf32>
    tpu.vector_store %arg11[%c0_61, %c0_62, %c0_63, %c768_64], %94 {strides = array<i32>} : memref<1x1x1x1024xf32, #tpu.memory_space<vmem>>, vector<1x1x1x256xf32>,
    %c0_i32_65 = arith.constant 0 : i32
    %95 = arith.cmpi eq, %arg2, %c0_i32_65 : i32
    %96 = arith.extui %95 : i1 to i32
    %c0_i32_66 = arith.constant 0 : i32
    %97 = arith.cmpi ne, %96, %c0_i32_66 : i32
    scf.if %97 {
      %c0_67 = arith.constant 0 : index
      %c0_68 = arith.constant 0 : index
      %c0_69 = arith.constant 0 : index
      %c0_70 = arith.constant 0 : index
      %98 = vector.load %arg11[%c0_67, %c0_68, %c0_69, %c0_70] : memref<1x1x1x1024xf32, #tpu.memory_space<vmem>>, vector<1x1x1x1024xf32>
      %99 = vector.shape_cast %98 : vector<1x1x1x1024xf32> to vector<1x1024xf32>
      %c0_71 = arith.constant 0 : index
      %c0_72 = arith.constant 0 : index
      %100 = vector.load %arg9[%c0_71, %c0_72] : memref<1x1024xf32, #tpu.memory_space<vmem>>, vector<1x1024xf32>
      %101 = arith.addf %99, %100 : vector<1x1024xf32>
      %c0_73 = arith.constant 0 : index
      %c0_74 = arith.constant 0 : index
      %c0_75 = arith.constant 0 : index
      %c0_76 = arith.constant 0 : index
      %102 = vector.load %arg11[%c0_73, %c0_74, %c0_75, %c0_76] : memref<1x1x1x1024xf32, #tpu.memory_space<vmem>>, vector<1x1x1x1024xf32>
      %103 = vector.shape_cast %102 : vector<1x1x1x1024xf32> to vector<1x1024xf32>
      %104 = vector.shape_cast %101 : vector<1x1024xf32> to vector<1x1x1x1024xf32>
      tpu.vector_store %arg11[%c0_73, %c0_74, %c0_75, %c0_76], %104 {strides = array<i32>} : memref<1x1x1x1024xf32, #tpu.memory_space<vmem>>, vector<1x1x1x1024xf32>,
    } else {
    }
    return
  }
  func.func @transform_0(%arg0: i32, %arg1: i32, %arg2: i32) -> (i32, i32, i32) {
    %c1_i32 = arith.constant 1 : i32
    %0 = arith.muli %arg0, %c1_i32 : i32
    %1 = arith.addi %0, %arg2 : i32
    %c0_i32 = arith.constant 0 : i32
    %2 = arith.minsi %1, %c0_i32 : i32
    %c0_i32_0 = arith.constant 0 : i32
    %c0_i32_1 = arith.constant 0 : i32
    return %arg1, %c0_i32_0, %2 : i32, i32, i32
  }
  func.func @transform_1(%arg0: i32, %arg1: i32, %arg2: i32) -> (i32, i32) {
    %c0_i32 = arith.constant 0 : i32
    %c0_i32_0 = arith.constant 0 : i32
    %c0_i32_1 = arith.constant 0 : i32
    return %c0_i32, %c0_i32_0 : i32, i32
  }
  func.func @transform_2(%arg0: i32, %arg1: i32, %arg2: i32) -> (i32, i32) {
    %c0_i32 = arith.constant 0 : i32
    %c0_i32_0 = arith.constant 0 : i32
    %c0_i32_1 = arith.constant 0 : i32
    return %c0_i32, %c0_i32_0 : i32, i32
  }
  func.func @transform_3(%arg0: i32, %arg1: i32, %arg2: i32) -> (i32, i32) {
    %c0_i32 = arith.constant 0 : i32
    %c0_i32_0 = arith.constant 0 : i32
    %c0_i32_1 = arith.constant 0 : i32
    return %c0_i32, %c0_i32_0 : i32, i32
  }
  func.func @transform_4(%arg0: i32, %arg1: i32, %arg2: i32) -> (i32, i32) {
    %c0_i32 = arith.constant 0 : i32
    %c0_i32_0 = arith.constant 0 : i32
    %c0_i32_1 = arith.constant 0 : i32
    return %c0_i32, %c0_i32_0 : i32, i32
  }
  func.func @transform_5(%arg0: i32, %arg1: i32, %arg2: i32) -> (i32, i32) {
    %c0_i32 = arith.constant 0 : i32
    %c0_i32_0 = arith.constant 0 : i32
    %c0_i32_1 = arith.constant 0 : i32
    return %c0_i32, %c0_i32_0 : i32, i32
  }
  func.func @transform_6(%arg0: i32, %arg1: i32, %arg2: i32) -> (i32, i32) {
    %c0_i32 = arith.constant 0 : i32
    %c0_i32_0 = arith.constant 0 : i32
    %c0_i32_1 = arith.constant 0 : i32
    return %c0_i32, %c0_i32_0 : i32, i32
  }
  func.func @transform_7(%arg0: i32, %arg1: i32, %arg2: i32) -> i32 {
    %c0_i32 = arith.constant 0 : i32
    %c0_i32_0 = arith.constant 0 : i32
    return %c0_i32 : i32
  }
  func.func @transform_8(%arg0: i32, %arg1: i32, %arg2: i32) -> (i32, i32, i32, i32) {
    %c0_i32 = arith.constant 0 : i32
    %c0_i32_0 = arith.constant 0 : i32
    %c0_i32_1 = arith.constant 0 : i32
    return %arg0, %arg1, %c0_i32, %c0_i32_0 : i32, i32, i32, i32
  }
}

</mosaic_0001>

<llo_original>
// kernel: tpu_custom_call.1
$region0: #{tpu_custom_call.1}
  #allocation0 [shape = 'u32[]', space=smem, size = 0x4, offset = 0x4, fixed_abs, tag = 'smem constant byte address 0x4 - core index']
  #allocation1 [shape = 'u32[144,128]{1,0:T(1,128)}', space=vmem, size = 0x12000, scoped, tag = 'internal scratch']
  %s0 = inlined_call_operand.vmem [shape: f32[2,6,16], index: 0, kind: input, shape index: {}]
  %s1 = inlined_call_operand.vmem [shape: f32[64,6], index: 1, kind: input, shape index: {}]
  %s2 = inlined_call_operand.vmem [shape: f32[1,64], index: 2, kind: input, shape index: {}]
  %s3 = inlined_call_operand.vmem [shape: bf16[64,128], index: 3, kind: input, shape index: {}]
  %s4 = inlined_call_operand.vmem [shape: f32[1,128], index: 4, kind: input, shape index: {}]
  %s5 = inlined_call_operand.hbm [shape: bf16[128,1024], index: 5, kind: input, shape index: {}]
  %s6 = inlined_call_operand.vmem [shape: f32[1,1024], index: 6, kind: input, shape index: {}]
  %s7 = inlined_call_operand.vmem [shape: f32[2], index: 7, kind: input, shape index: {}]
  %s8 = inlined_call_operand.hbm [shape: f32[1,2,1,1024], index: 8, kind: output, shape index: {}]
  %s9 = sld [smem:[#allocation0]]
  $region81: #{tpu_custom_call.1} parent=0
    _
  %s11 = ssub.s32 1, %s9
  %s12 = scalar_select 0, %s11, %s9
  $region1: #{tpu_custom_call.1} parent=0
    #allocation2 [shape = 'u8[262144]{0}', space=vmem, size = 0x40000, scoped, tag = 'input window, operand 5, single buffered']
    #allocation3 [shape = 's32[2]{0}', space=sflag, size = 0x8, scoped, tag = 'scoped memory for tpu_custom_call.1']
    #allocation4 [shape = 's32[2]{0}', space=sflag, size = 0x8, scoped, tag = 'scoped memory for tpu_custom_call.1']
    #allocation5 [shape = 's32[2]{0}', space=sflag, size = 0x8, scoped, tag = 'scoped memory for tpu_custom_call.1']
    #allocation6 [shape = 'u8[512]{0}', space=smem, size = 0x200, scoped, tag = 'input window, operand 7, single buffered']
    #allocation7 [shape = 'u8[8192]{0}', space=vmem, size = 0x2000, scoped, tag = 'output window, operand 0']
    %13 = vsyncpa [#allocation3], 0
    %14 = vsyncpa [#allocation5], 0
    %15 = vsyncpa [#allocation4], 0
    %s16 = scalar_lea.sflag [#allocation4], 1
    %17 = vsyncpa %s16, 0
    loop: start=0, step=1, limit=4
    $region2: #{tpu_custom_call.1} parent=1 // loop_pre_header
      _
    $region3: #{tpu_custom_call.1} parent=1 // loop_header
      %s19 = sphi 0, %s23
      %p20 = scmp.ge.s32.totalorder %s19, 4
      %s26 = sphi 0, %s45
      %s27 = sphi 0, %s41
      %s28 = sphi 0, %s37
      %s29 = sphi 0, %s26
      %s30 = sphi 0, %s27
      %s31 = sphi 0, %s28
      %s32 = sphi 0, %s29
      %s33 = sphi 0, %s30
      %s34 = sphi 0, %s31
      %s56 = sphi 0, %s58
      %s59 = sphi 0, %s56
      %s60 = sphi 0, %s59
      %s76 = sphi 0, %s60
      %s80 = sphi 0, %s80
      %s82 = sphi 0, %s80
      %s83 = sphi 0, %s82
      %s97 = sphi 0, %s83
      %s101 = sphi 0, %s101
      %s103 = sphi 0, %s101
      %s104 = sphi 0, %s103
      %s118 = sphi 0, %s104
      %s122 = sphi 0, %s122
      %s124 = sphi 0, %s122
      %s125 = sphi 0, %s124
      %s139 = sphi 0, %s125
      %s143 = sphi 0, %s143
      %s145 = sphi 0, %s143
      %s146 = sphi 0, %s145
      %s160 = sphi 0, %s146
      %s164 = sphi 0, %s164
      %s166 = sphi 0, %s164
      %s167 = sphi 0, %s166
      %s181 = sphi 0, %s167
      %s185 = sphi 0, %s185
      %s187 = sphi 0, %s185
      %s188 = sphi 0, %s187
      %s202 = sphi 0, %s188
      %s206 = sphi 0, %s206
      %s208 = sphi 0, %s206
      %s209 = sphi 0, %s208
      %s223 = sphi 0, %s209
      %s231 = sphi 0, %s233
      %s234 = sphi 0, %s231
      %s235 = sphi 0, %s234
      %s251 = sphi 0, %s235
    $region4: #{tpu_custom_call.1} parent=1 // loop_header_branch
      %22 = sbr.rel (%p20) target = $region8
    $region5: #{tpu_custom_call.1} parent=1 // loop_body
      %s24 = ssub.s32 %s19, 1
      %s25 = ssub.s32 %s19, 2
      %s35 = sadd.s32 1, %s28
      %p36 = scmp.ge.s32.totalorder %s35, 1
      %s37 = scalar_select %p36, 0, %s35
      %s38 = sadd.s32 1, %s27
      %s39 = scalar_select %p36, %s38, %s27
      %p40 = scmp.ge.s32.totalorder %s39, 2
      %s41 = scalar_select %p40, 0, %s39
      %s42 = sadd.s32 1, %s26
      %s43 = scalar_select %p40, %s42, %s26
      %p44 = scmp.ge.s32.totalorder %s43, 1
      %s45 = scalar_select %p44, 0, %s43
      %s46 = sadd.s32 %s26, %s28
      %p47 = scmp.lt.s32.totalorder %s46, 0
      %s48 = scalar_select %p47, %s46, 0
      %s49 = sadd.s32 %s45, %s37
      %p50 = scmp.lt.s32.totalorder %s49, 0
      %s51 = scalar_select %p50, %s49, 0
      %s52 = ssub.s32 %s27, %s41
      %s53 = ssub.s32 %s48, %s51
      %s54 = sor.u32 %s52, %s53
      %p55 = scmp.eq.s32.totalorder %s54, 0
      %s57 = sadd.s32 %s56, 1
      %s58 = scalar_select %p55, %s56, %s57
      %p61 = pneg %p55
      %p62 = scmp.eq.s32.totalorder %s19, 1
      %p63 = por %p61, %p62
      %p64 = scmp.ne.s32.totalorder %s56, %s59
      %p65 = scmp.eq.s32.totalorder %s19, 0
      %p66 = por %p64, %p65
      %p67 = scmp.ne.s32.totalorder %s56, %s59
      %p68 = scmp.eq.s32.totalorder %s24, 1
      %p69 = por %p67, %p68
      %p70 = scmp.ne.s32.totalorder %s59, %s60
      %p71 = scmp.eq.s32.totalorder %s24, 0
      %p72 = por %p70, %p71
      %p73 = scmp.ne.s32.totalorder %s59, %s60
      %p74 = scmp.eq.s32.totalorder %s25, 1
      %p75 = por %p73, %p74
      %p77 = scmp.ne.s32.totalorder %s60, %s76
      %p78 = scmp.eq.s32.totalorder %s25, 0
      %p79 = por %p77, %p78
      %s81 = sadd.s32 %s80, 1
      %p84 = scmp.eq.s32.totalorder %s19, 1
      %p85 = scmp.ne.s32.totalorder %s80, %s82
      %p86 = scmp.eq.s32.totalorder %s19, 0
      %p87 = por %p85, %p86
      %p88 = scmp.ne.s32.totalorder %s80, %s82
      %p89 = scmp.eq.s32.totalorder %s24, 1
      %p90 = por %p88, %p89
      %p91 = scmp.ne.s32.totalorder %s82, %s83
      %p92 = scmp.eq.s32.totalorder %s24, 0
      %p93 = por %p91, %p92
      %p94 = scmp.ne.s32.totalorder %s82, %s83
      %p95 = scmp.eq.s32.totalorder %s25, 1
      %p96 = por %p94, %p95
      %p98 = scmp.ne.s32.totalorder %s83, %s97
      %p99 = scmp.eq.s32.totalorder %s25, 0
      %p100 = por %p98, %p99
      %s102 = sadd.s32 %s101, 1
      %p105 = scmp.eq.s32.totalorder %s19, 1
      %p106 = scmp.ne.s32.totalorder %s101, %s103
      %p107 = scmp.eq.s32.totalorder %s19, 0
      %p108 = por %p106, %p107
      %p109 = scmp.ne.s32.totalorder %s101, %s103
      %p110 = scmp.eq.s32.totalorder %s24, 1
      %p111 = por %p109, %p110
      %p112 = scmp.ne.s32.totalorder %s103, %s104
      %p113 = scmp.eq.s32.totalorder %s24, 0
      %p114 = por %p112, %p113
      %p115 = scmp.ne.s32.totalorder %s103, %s104
      %p116 = scmp.eq.s32.totalorder %s25, 1
      %p117 = por %p115, %p116
      %p119 = scmp.ne.s32.totalorder %s104, %s118
      %p120 = scmp.eq.s32.totalorder %s25, 0
      %p121 = por %p119, %p120
      %s123 = sadd.s32 %s122, 1
      %p126 = scmp.eq.s32.totalorder %s19, 1
      %p127 = scmp.ne.s32.totalorder %s122, %s124
      %p128 = scmp.eq.s32.totalorder %s19, 0
      %p129 = por %p127, %p128
      %p130 = scmp.ne.s32.totalorder %s122, %s124
      %p131 = scmp.eq.s32.totalorder %s24, 1
      %p132 = por %p130, %p131
      %p133 = scmp.ne.s32.totalorder %s124, %s125
      %p134 = scmp.eq.s32.totalorder %s24, 0
      %p135 = por %p133, %p134
      %p136 = scmp.ne.s32.totalorder %s124, %s125
      %p137 = scmp.eq.s32.totalorder %s25, 1
      %p138 = por %p136, %p137
      %p140 = scmp.ne.s32.totalorder %s125, %s139
      %p141 = scmp.eq.s32.totalorder %s25, 0
      %p142 = por %p140, %p141
      %s144 = sadd.s32 %s143, 1
      %p147 = scmp.eq.s32.totalorder %s19, 1
      %p148 = scmp.ne.s32.totalorder %s143, %s145
      %p149 = scmp.eq.s32.totalorder %s19, 0
      %p150 = por %p148, %p149
      %p151 = scmp.ne.s32.totalorder %s143, %s145
      %p152 = scmp.eq.s32.totalorder %s24, 1
      %p153 = por %p151, %p152
      %p154 = scmp.ne.s32.totalorder %s145, %s146
      %p155 = scmp.eq.s32.totalorder %s24, 0
      %p156 = por %p154, %p155
      %p157 = scmp.ne.s32.totalorder %s145, %s146
      %p158 = scmp.eq.s32.totalorder %s25, 1
      %p159 = por %p157, %p158
      %p161 = scmp.ne.s32.totalorder %s146, %s160
      %p162 = scmp.eq.s32.totalorder %s25, 0
      %p163 = por %p161, %p162
      %s165 = sadd.s32 %s164, 1
      %p168 = scmp.eq.s32.totalorder %s19, 1
      %p169 = scmp.ne.s32.totalorder %s164, %s166
      %p170 = scmp.eq.s32.totalorder %s19, 0
      %p171 = por %p169, %p170
      %p172 = scmp.ne.s32.totalorder %s164, %s166
      %p173 = scmp.eq.s32.totalorder %s24, 1
      %p174 = por %p172, %p173
      %p175 = scmp.ne.s32.totalorder %s166, %s167
      %p176 = scmp.eq.s32.totalorder %s24, 0
      %p177 = por %p175, %p176
      %p178 = scmp.ne.s32.totalorder %s166, %s167
      %p179 = scmp.eq.s32.totalorder %s25, 1
      %p180 = por %p178, %p179
      %p182 = scmp.ne.s32.totalorder %s167, %s181
      %p183 = scmp.eq.s32.totalorder %s25, 0
      %p184 = por %p182, %p183
      %s186 = sadd.s32 %s185, 1
      %p189 = scmp.eq.s32.totalorder %s19, 1
      %p190 = scmp.ne.s32.totalorder %s185, %s187
      %p191 = scmp.eq.s32.totalorder %s19, 0
      %p192 = por %p190, %p191
      %p193 = scmp.ne.s32.totalorder %s185, %s187
      %p194 = scmp.eq.s32.totalorder %s24, 1
      %p195 = por %p193, %p194
      %p196 = scmp.ne.s32.totalorder %s187, %s188
      %p197 = scmp.eq.s32.totalorder %s24, 0
      %p198 = por %p196, %p197
      %p199 = scmp.ne.s32.totalorder %s187, %s188
      %p200 = scmp.eq.s32.totalorder %s25, 1
      %p201 = por %p199, %p200
      %p203 = scmp.ne.s32.totalorder %s188, %s202
      %p204 = scmp.eq.s32.totalorder %s25, 0
      %p205 = por %p203, %p204
      %s207 = sadd.s32 %s206, 1
      %p210 = scmp.eq.s32.totalorder %s19, 1
      %p211 = scmp.ne.s32.totalorder %s206, %s208
      %p212 = scmp.eq.s32.totalorder %s19, 0
      %p213 = por %p211, %p212
      %p214 = scmp.ne.s32.totalorder %s206, %s208
      %p215 = scmp.eq.s32.totalorder %s24, 1
      %p216 = por %p214, %p215
      %p217 = scmp.ne.s32.totalorder %s208, %s209
      %p218 = scmp.eq.s32.totalorder %s24, 0
      %p219 = por %p217, %p218
      %p220 = scmp.ne.s32.totalorder %s208, %s209
      %p221 = scmp.eq.s32.totalorder %s25, 1
      %p222 = por %p220, %p221
      %p224 = scmp.ne.s32.totalorder %s209, %s223
      %p225 = scmp.eq.s32.totalorder %s25, 0
      %p226 = por %p224, %p225
      %s227 = ssub.s32 %s26, %s45
      %s228 = ssub.s32 %s27, %s41
      %s229 = sor.u32 %s227, %s228
      %p230 = scmp.eq.s32.totalorder %s229, 0
      %s232 = sadd.s32 %s231, 1
      %s233 = scalar_select %p230, %s231, %s232
      %p236 = pneg %p230
      %p237 = scmp.eq.s32.totalorder %s19, 1
      %p238 = por %p236, %p237
      %p239 = scmp.ne.s32.totalorder %s231, %s234
      %p240 = scmp.eq.s32.totalorder %s19, 0
      %p241 = por %p239, %p240
      %p242 = scmp.ne.s32.totalorder %s231, %s234
      %p243 = scmp.eq.s32.totalorder %s24, 1
      %p244 = por %p242, %p243
      %p245 = scmp.ne.s32.totalorder %s234, %s235
      %p246 = scmp.eq.s32.totalorder %s24, 0
      %p247 = por %p245, %p246
      %p248 = scmp.ne.s32.totalorder %s234, %s235
      %p249 = scmp.eq.s32.totalorder %s25, 1
      %p250 = por %p248, %p249
      %p252 = scmp.ne.s32.totalorder %s235, %s251
      %p253 = scmp.eq.s32.totalorder %s25, 0
      %p254 = por %p252, %p253
      %p255 = scmp.le.s32.totalorder 1, %s19
      %p256 = scmp.lt.s32.totalorder %s19, 3
      %p257 = pnand %p255, %p256
      %p258 = pneg %p257
      // Predicated region
      $region9: #{tpu_custom_call.1} parent=5 // pred_check
        _
      $region10: #{tpu_custom_call.1} parent=5 // pred_check_branch
        %260 = sbr.rel (%p257) target = $region12
      $region11: #{tpu_custom_call.1} parent=5 // pred_region
        %s261 = ssub.s32 %s19, 1
        // Predicated region
        $region13: #{tpu_custom_call.1} parent=11 // pred_check
          %p262 = pneg %p93
        $region14: #{tpu_custom_call.1} parent=11 // pred_check_branch
          %264 = sbr.rel (%p262) target = $region16
        $region15: #{tpu_custom_call.1} parent=11 // pred_region
          _
        $region16: #{tpu_custom_call.1} parent=11 // pred_fallthru
          _
        // Predicated region
        $region17: #{tpu_custom_call.1} parent=11 // pred_check
          %p265 = pneg %p114
        $region18: #{tpu_custom_call.1} parent=11 // pred_check_branch
          %267 = sbr.rel (%p265) target = $region20
        $region19: #{tpu_custom_call.1} parent=11 // pred_region
          _
        $region20: #{tpu_custom_call.1} parent=11 // pred_fallthru
          _
        // Predicated region
        $region21: #{tpu_custom_call.1} parent=11 // pred_check
          %p268 = pneg %p135
        $region22: #{tpu_custom_call.1} parent=11 // pred_check_branch
          %270 = sbr.rel (%p268) target = $region24
        $region23: #{tpu_custom_call.1} parent=11 // pred_region
          _
        $region24: #{tpu_custom_call.1} parent=11 // pred_fallthru
          _
        // Predicated region
        $region25: #{tpu_custom_call.1} parent=11 // pred_check
          %p271 = pneg %p156
        $region26: #{tpu_custom_call.1} parent=11 // pred_check_branch
          %273 = sbr.rel (%p271) target = $region28
        $region27: #{tpu_custom_call.1} parent=11 // pred_region
          _
        $region28: #{tpu_custom_call.1} parent=11 // pred_fallthru
          _
        // Predicated region
        $region29: #{tpu_custom_call.1} parent=11 // pred_check
          %p274 = pneg %p177
        $region30: #{tpu_custom_call.1} parent=11 // pred_check_branch
          %276 = sbr.rel (%p274) target = $region32
        $region31: #{tpu_custom_call.1} parent=11 // pred_region
          %s278 = ssub.s32 8192, 8192
          %279 = vsyncadd [#allocation3], %s278
          %s280 = sshll.u32 [#allocation2], 4
          %s281 = int_to_ptr.vmem [resolvable:$true] %s280
          %286 = dma.hbm_to_vmem [thread:$0]  %s5, 8192, %s281, [#allocation3], 512, 512, 32
        $region32: #{tpu_custom_call.1} parent=11 // pred_fallthru
          _
        // Predicated region
        $region33: #{tpu_custom_call.1} parent=11 // pred_check
          %p287 = pneg %p198
        $region34: #{tpu_custom_call.1} parent=11 // pred_check_branch
          %289 = sbr.rel (%p287) target = $region36
        $region35: #{tpu_custom_call.1} parent=11 // pred_region
          _
        $region36: #{tpu_custom_call.1} parent=11 // pred_fallthru
          _
        // Predicated region
        $region37: #{tpu_custom_call.1} parent=11 // pred_check
          %p290 = pneg %p219
        $region38: #{tpu_custom_call.1} parent=11 // pred_check_branch
          %292 = sbr.rel (%p290) target = $region40
        $region39: #{tpu_custom_call.1} parent=11 // pred_region
          %s294 = ssub.s32 16, 16
          %295 = vsyncadd [#allocation5], %s294
          %s297 = sshll.u32 %s7, 4
          %s298 = int_to_ptr.vmem [resolvable:$true] %s297
          %300 = dma.vmem_to_smem %s298, 16, [#allocation6], [#allocation5]
        $region40: #{tpu_custom_call.1} parent=11 // pred_fallthru
          _
      $region12: #{tpu_custom_call.1} parent=5 // pred_fallthru
        _
      %p301 = scmp.lt.s32.totalorder %s19, 2
      // Predicated region
      $region41: #{tpu_custom_call.1} parent=5 // pred_check
        %p302 = pneg %p301
      $region42: #{tpu_custom_call.1} parent=5 // pred_check_branch
        %304 = sbr.rel (%p302) target = $region44
      $region43: #{tpu_custom_call.1} parent=5 // pred_region
        // Predicated region
        $region45: #{tpu_custom_call.1} parent=43 // pred_check
          %p305 = pneg %p66
        $region46: #{tpu_custom_call.1} parent=43 // pred_check_branch
          %307 = sbr.rel (%p305) target = $region48
        $region47: #{tpu_custom_call.1} parent=43 // pred_region
          %s308 = sadd.s32 %s26, %s28
          %p309 = scmp.lt.s32.totalorder %s308, 0
          %s310 = scalar_select %p309, %s308, 0
          %p311 = scmp.lt.s32.totalorder %s27, 1
          %s312 = scalar_select %p311, %s27, 1
          %p313 = scmp.lt.s32.totalorder %s310, 0
          %s314 = scalar_select %p313, %s310, 0
          %s315 = sadd.s32 %s314, %s312
          %s316 = smul.addr %s315, 8
          %s317 = scalar_lea.vmem %s0, %s316
          %s318 = sadd.s32 %s26, %s28
          %p319 = scmp.lt.s32.totalorder %s318, 0
          %s320 = scalar_select %p319, %s318, 0
        $region48: #{tpu_custom_call.1} parent=43 // pred_fallthru
          _
      $region44: #{tpu_custom_call.1} parent=5 // pred_fallthru
        _
      %p321 = scmp.le.s32.totalorder 1, %s19
      %p322 = scmp.lt.s32.totalorder %s19, 3
      %p323 = pnand %p321, %p322
      %p324 = pneg %p323
      // Predicated region
      $region49: #{tpu_custom_call.1} parent=5 // pred_check
        _
      $region50: #{tpu_custom_call.1} parent=5 // pred_check_branch
        %326 = sbr.rel (%p323) target = $region52
      $region51: #{tpu_custom_call.1} parent=5 // pred_region
        %s327 = ssub.s32 %s19, 1
        // Predicated region
        $region53: #{tpu_custom_call.1} parent=51 // pred_check
          %p328 = pneg %p177
        $region54: #{tpu_custom_call.1} parent=51 // pred_check_branch
          %330 = sbr.rel (%p328) target = $region56
        $region55: #{tpu_custom_call.1} parent=51 // pred_region
          %331 = dma.done [#allocation3], 8192
        $region56: #{tpu_custom_call.1} parent=51 // pred_fallthru
          _
        // Predicated region
        $region57: #{tpu_custom_call.1} parent=51 // pred_check
          %p332 = pneg %p219
        $region58: #{tpu_custom_call.1} parent=51 // pred_check_branch
          %334 = sbr.rel (%p332) target = $region60
        $region59: #{tpu_custom_call.1} parent=51 // pred_region
          %335 = dma.done [#allocation5], 16
        $region60: #{tpu_custom_call.1} parent=51 // pred_fallthru
          _
        %336 = sfence
        %s337 = sadd.s32 %s29, %s31
        %p338 = scmp.lt.s32.totalorder %s337, 0
        %s339 = scalar_select %p338, %s337, 0
        %p340 = scmp.lt.s32.totalorder %s30, 1
        %s341 = scalar_select %p340, %s30, 1
        %p342 = scmp.lt.s32.totalorder %s339, 0
        %s343 = scalar_select %p342, %s339, 0
        %s344 = sadd.s32 %s343, %s341
        %s345 = smul.addr %s344, 8
        %s346 = scalar_lea.vmem %s0, %s345
        %p347 = pneg %p72
        %p348 = pneg %p69
        %p349 = pneg %p93
        %p350 = pneg %p90
        %p351 = pneg %p114
        %p352 = pneg %p111
        %p353 = pneg %p135
        %p354 = pneg %p132
        %p355 = pneg %p156
        %p356 = pneg %p153
        %p357 = pneg %p177
        %p358 = pneg %p174
        %p359 = pneg %p198
        %p360 = pneg %p195
        %p361 = pneg %p219
        %p362 = pneg %p216
        %p363 = pneg %p247
        %p364 = pneg %p244
        %s365 = sand.u32 %s234, 1
        %s366 = scalar_lea.sflag [#allocation4], %s365
        %s367 = sand.u32 %s234, 1
        %s368 = smul.addr %s367, 8
        %s369 = scalar_lea.vmem [#allocation7], %s368
        %s370 = sadd.s32 %s29, %s31
        %p371 = scmp.lt.s32.totalorder %s370, 0
        %s372 = scalar_select %p371, %s370, 0
        %p373 = scmp.lt.s32.totalorder %s30, 1
        %s374 = scalar_select %p373, %s30, 1
        %p375 = scmp.lt.s32.totalorder %s372, 0
        %s376 = scalar_select %p375, %s372, 0
        %s377 = sadd.s32 %s376, %s374
        %s378 = smul.addr %s377, 8
        %s379 = scalar_lea.vmem %s0, %s378
        %s380 = sadd.s32 %s29, %s31
        %p381 = scmp.lt.s32.totalorder %s380, 0
        %s382 = scalar_select %p381, %s380, 0
        %p384 = scmp.eq.s32.totalorder %s31, 0
        // Predicated region
        $region61: #{tpu_custom_call.1} parent=51 // pred_check
          %p385 = pneg %p384
        $region62: #{tpu_custom_call.1} parent=51 // pred_check_branch
          %387 = sbr.rel (%p385) target = $region64
        $region63: #{tpu_custom_call.1} parent=51 // pred_region
          %388 = vst [vmem:[%s369] sm:$0xff] -inf
        $region64: #{tpu_custom_call.1} parent=51 // pred_fallthru
          _
        %s389 = sadd.s32 %s29, %s31
        %p390 = scmp.lt.s32.totalorder %s389, 0
        %s391 = scalar_select %p390, %s389, 0
        %s392 = smul.u32 %s391, 128
        %v393 = vlaneseq
        %v394 = vshrl.u32 %v393, 7
        %v395 = vadd.s32 %v394, 8
        %v396 = vadd.s32 %v394, 16
        %v397 = vadd.s32 %v394, 24
        %v398 = vadd.s32 %v394, 32
        %v399 = vadd.s32 %v394, 40
        %v400 = vadd.s32 %v394, 48
        %v401 = vadd.s32 %v394, 56
        %v402 = vadd.s32 %v394, 64
        %v403 = vadd.s32 %v394, 72
        %v404 = vadd.s32 %v394, 80
        %v405 = vadd.s32 %v394, 88
        %v406 = vadd.s32 %v394, 96
        %v407 = vadd.s32 %v394, 104
        %v408 = vadd.s32 %v394, 112
        %v409 = vadd.s32 %v394, 120
        %v410 = vstv %s392
        %v411 = vadd.s32 %v410, %v394
        %v412 = vadd.s32 %v410, %v395
        %v413 = vadd.s32 %v410, %v396
        %v414 = vadd.s32 %v410, %v397
        %v415 = vadd.s32 %v410, %v398
        %v416 = vadd.s32 %v410, %v399
        %v417 = vadd.s32 %v410, %v400
        %v418 = vadd.s32 %v410, %v401
        %v419 = vadd.s32 %v410, %v402
        %v420 = vadd.s32 %v410, %v403
        %v421 = vadd.s32 %v410, %v404
        %v422 = vadd.s32 %v410, %v405
        %v423 = vadd.s32 %v410, %v406
        %v424 = vadd.s32 %v410, %v407
        %v425 = vadd.s32 %v410, %v408
        %v426 = vadd.s32 %v410, %v409
        %vm427 = vcmp.lt.s32.totalorder %v411, 16
        %vm428 = vcmp.lt.s32.totalorder %v412, 16
        %vm429 = vcmp.lt.s32.totalorder %v413, 16
        %vm430 = vcmp.lt.s32.totalorder %v414, 16
        %vm431 = vcmp.lt.s32.totalorder %v415, 16
        %vm432 = vcmp.lt.s32.totalorder %v416, 16
        %vm433 = vcmp.lt.s32.totalorder %v417, 16
        %vm434 = vcmp.lt.s32.totalorder %v418, 16
        %vm435 = vcmp.lt.s32.totalorder %v419, 16
        %vm436 = vcmp.lt.s32.totalorder %v420, 16
        %vm437 = vcmp.lt.s32.totalorder %v421, 16
        %vm438 = vcmp.lt.s32.totalorder %v422, 16
        %vm439 = vcmp.lt.s32.totalorder %v423, 16
        %vm440 = vcmp.lt.s32.totalorder %v424, 16
        %vm441 = vcmp.lt.s32.totalorder %v425, 16
        %vm442 = vcmp.lt.s32.totalorder %v426, 16
        %v443 = vld [vmem:[%s379] sm:$0x3f]
        %v444 = vld [vmem:[%s1] sm:$0xff]
        %v445 = vld [vmem:[%s1 + $0x8] sm:$0xff]
        %v446 = vld [vmem:[%s1 + $0x10] sm:$0xff]
        %v447 = vld [vmem:[%s1 + $0x18] sm:$0xff]
        %v448 = vld [vmem:[%s1 + $0x20] sm:$0xff]
        %v449 = vld [vmem:[%s1 + $0x28] sm:$0xff]
        %v450 = vld [vmem:[%s1 + $0x30] sm:$0xff]
        %v451 = vld [vmem:[%s1 + $0x38] sm:$0xff]
        %vm452 = vcmask 48128
        %v454 = vsel %vm452, %v444, 0
        %v457 = vsel %vm452, %v445, 0
        %v460 = vsel %vm452, %v446, 0
        %v463 = vsel %vm452, %v447, 0
        %v466 = vsel %vm452, %v448, 0
        %v469 = vsel %vm452, %v449, 0
        %v472 = vsel %vm452, %v450, 0
        %v475 = vsel %vm452, %v451, 0
        %vm477 = vcmask 1045504
        %v479 = vsel %vm477, %v443, 0
        %481 = vmatprep.subr.mxu0 0.0
        %482 = vmatpush1.msra.mxu0 %v479
        %483 = vmatprep.subr.mxu0 0.0
        %484 = vmatpush1.msra.mxu0 0.0
        %485 = vmatprep.subr.mxu0 0.0
        %486 = vmatpush1.msra.mxu0 0.0
        %487 = vmatprep.subr.mxu0 0.0
        %488 = vmatpush1.msra.mxu0 0.0
        %489 = vmatprep.subr.mxu0 0.0
        %490 = vmatpush1.msra.mxu0 0.0
        %491 = vmatprep.subr.mxu0 0.0
        %492 = vmatpush1.msra.mxu0 0.0
        %493 = vmatprep.subr.mxu0 0.0
        %494 = vmatpush1.msra.mxu0 0.0
        %495 = vmatprep.subr.mxu0 0.0
        %496 = vmatpush1.msra.mxu0 0.0
        %497 = vmatprep.subr.mxu0 0.0
        %498 = vmatpush1.msra.mxu0 0.0
        %499 = vmatprep.subr.mxu0 0.0
        %500 = vmatpush1.msra.mxu0 0.0
        %501 = vmatprep.subr.mxu0 0.0
        %502 = vmatpush1.msra.mxu0 0.0
        %503 = vmatprep.subr.mxu0 0.0
        %504 = vmatpush1.msra.mxu0 0.0
        %505 = vmatprep.subr.mxu0 0.0
        %506 = vmatpush1.msra.mxu0 0.0
        %507 = vmatprep.subr.mxu0 0.0
        %508 = vmatpush1.msra.mxu0 0.0
        %509 = vmatprep.subr.mxu0 0.0
        %510 = vmatpush1.msra.mxu0 0.0
        %511 = vmatprep.subr.mxu0 0.0
        %512 = vmatpush1.msra.mxu0 0.0
        %513 = vmatprep.subr.mxu0 0.0
        %514 = vmatpush1.msra.mxu0 0.0
        %515 = vmatprep.subr.mxu0 0.0
        %516 = vmatpush1.msra.mxu0 0.0
        %517 = vmatprep.subr.mxu0 0.0
        %518 = vmatpush1.msra.mxu0 0.0
        %519 = vmatprep.subr.mxu0 0.0
        %520 = vmatpush1.msra.mxu0 0.0
        %521 = vmatprep.subr.mxu0 0.0
        %522 = vmatpush1.msra.mxu0 0.0
        %523 = vmatprep.subr.mxu0 0.0
        %524 = vmatpush1.msra.mxu0 0.0
        %525 = vmatprep.subr.mxu0 0.0
        %526 = vmatpush1.msra.mxu0 0.0
        %527 = vmatprep.subr.mxu0 0.0
        %528 = vmatpush1.msra.mxu0 0.0
        %529 = vmatprep.subr.mxu0 0.0
        %530 = vmatpush1.msra.mxu0 0.0
        %531 = vmatprep.subr.mxu0 0.0
        %532 = vmatpush1.msra.mxu0 0.0
        %533 = vmatprep.subr.mxu0 0.0
        %534 = vmatpush1.msra.mxu0 0.0
        %535 = vmatprep.subr.mxu0 0.0
        %536 = vmatpush1.msra.mxu0 0.0
        %537 = vmatprep.subr.mxu0 0.0
        %538 = vmatpush1.msra.mxu0 0.0
        %539 = vmatprep.subr.mxu0 0.0
        %540 = vmatpush1.msra.mxu0 0.0
        %541 = vmatprep.subr.mxu0 0.0
        %542 = vmatpush1.msra.mxu0 0.0
        %543 = vmatprep.subr.mxu0 0.0
        %544 = vmatpush1.msra.mxu0 0.0
        %545 = vmatprep.mubr.f32.mxu0 0.0
        %546 = vmatmul.mubr.f32.gmra.mrb[0].mxu0 %v454
        %v547 = vpop.f32.mrb[0].mxu0
        %v548 = vadd.f32 0.0, %v547
        %v549 = vpop.f32.mrb[0].mxu0
        %550 = vmatprep.mubr.f32.mxu0 0.0
        %551 = vmatmul.mubr.f32.gmra.mrb[0].mxu0 %v457
        %v552 = vpop.f32.mrb[0].mxu0
        %v553 = vadd.f32 0.0, %v552
        %v554 = vpop.f32.mrb[0].mxu0
        %555 = vmatprep.mubr.f32.mxu0 0.0
        %556 = vmatmul.mubr.f32.gmra.mrb[0].mxu0 %v460
        %v557 = vpop.f32.mrb[0].mxu0
        %v558 = vadd.f32 0.0, %v557
        %v559 = vpop.f32.mrb[0].mxu0
        %560 = vmatprep.mubr.f32.mxu0 0.0
        %561 = vmatmul.mubr.f32.gmra.mrb[0].mxu0 %v463
        %v562 = vpop.f32.mrb[0].mxu0
        %v563 = vadd.f32 0.0, %v562
        %v564 = vpop.f32.mrb[0].mxu0
        %565 = vmatprep.mubr.f32.mxu0 0.0
        %566 = vmatmul.mubr.f32.gmra.mrb[0].mxu0 %v466
        %v567 = vpop.f32.mrb[0].mxu0
        %v568 = vadd.f32 0.0, %v567
        %v569 = vpop.f32.mrb[0].mxu0
        %570 = vmatprep.mubr.f32.mxu0 0.0
        %571 = vmatmul.mubr.f32.gmra.mrb[0].mxu0 %v469
        %v572 = vpop.f32.mrb[0].mxu0
        %v573 = vadd.f32 0.0, %v572
        %v574 = vpop.f32.mrb[0].mxu0
        %575 = vmatprep.mubr.f32.mxu0 0.0
        %576 = vmatmul.mubr.f32.gmra.mrb[0].mxu0 %v472
        %v577 = vpop.f32.mrb[0].mxu0
        %v578 = vadd.f32 0.0, %v577
        %v579 = vpop.f32.mrb[0].mxu0
        %580 = vmatprep.mubr.f32.mxu0 0.0
        %581 = vmatmul.mubr.f32.gmra.mrb[0].mxu0 %v475
        %v582 = vpop.f32.mrb[0].mxu0
        %v583 = vadd.f32 0.0, %v582
        %v584 = vpop.f32.mrb[0].mxu0
        %585 = vdwg.mxu0
        %586 = vxpose.xlu0.b32.start [1/16] %v548, 128
        %587 = vxpose.xlu0.b32.cont [2/16] %v553, 128
        %588 = vxpose.xlu0.b32.cont [3/16] %v558, 128
        %589 = vxpose.xlu0.b32.cont [4/16] %v563, 128
        %590 = vxpose.xlu0.b32.cont [5/16] %v568, 128
        %591 = vxpose.xlu0.b32.cont [6/16] %v573, 128
        %592 = vxpose.xlu0.b32.cont [7/16] %v578, 128
        %593 = vxpose.xlu0.b32.cont [8/16] %v583, 128
        %594 = vxpose.xlu0.b32.cont [9/16] 0.0, 128
        %595 = vxpose.xlu0.b32.cont [10/16] 0.0, 128
        %596 = vxpose.xlu0.b32.cont [11/16] 0.0, 128
        %597 = vxpose.xlu0.b32.cont [12/16] 0.0, 128
        %598 = vxpose.xlu0.b32.cont [13/16] 0.0, 128
        %599 = vxpose.xlu0.b32.cont [14/16] 0.0, 128
        %600 = vxpose.xlu0.b32.cont [15/16] 0.0, 128
        %601 = vxpose.xlu0.b32.end [16/16] 0.0, 128
        %v602 = vpop.trf.xlu0
        %v603 = vpop.trf.xlu0
        %v604 = vpop.trf.xlu0
        %v605 = vpop.trf.xlu0
        %v606 = vpop.trf.xlu0
        %v607 = vpop.trf.xlu0
        %v608 = vpop.trf.xlu0
        %v609 = vpop.trf.xlu0
        %v610 = vpop.trf.xlu0
        %v611 = vpop.trf.xlu0
        %v612 = vpop.trf.xlu0
        %v613 = vpop.trf.xlu0
        %v614 = vpop.trf.xlu0
        %v615 = vpop.trf.xlu0
        %v616 = vpop.trf.xlu0
        %v617 = vpop.trf.xlu0
        %v618 = vld [vmem:[%s2] sm:$0x1]
        %v620 = vlaneseq
        %v621 = vshrl.u32 %v620, 7
        %v622 = vsub.s32 0, %v621
        %v623 = vrot.slane %v618, %v622
        %v625 = vadd.f32 %v602, %v623
        %v626 = vadd.f32 %v603, %v623
        %v627 = vadd.f32 %v604, %v623
        %v628 = vadd.f32 %v605, %v623
        %v629 = vadd.f32 %v606, %v623
        %v630 = vadd.f32 %v607, %v623
        %v631 = vadd.f32 %v608, %v623
        %v632 = vadd.f32 %v609, %v623
        %v633 = vadd.f32 %v610, %v623
        %v634 = vadd.f32 %v611, %v623
        %v635 = vadd.f32 %v612, %v623
        %v636 = vadd.f32 %v613, %v623
        %v637 = vadd.f32 %v614, %v623
        %v638 = vadd.f32 %v615, %v623
        %v639 = vadd.f32 %v616, %v623
        %v640 = vadd.f32 %v617, %v623
        %s641 = sld [smem:[#allocation6]]
        %vm642 = vcmp.gt.f32.partialorder %v625, 0.0
        %vm643 = vcmp.gt.f32.partialorder %v626, 0.0
        %vm644 = vcmp.gt.f32.partialorder %v627, 0.0
        %vm645 = vcmp.gt.f32.partialorder %v628, 0.0
        %vm646 = vcmp.gt.f32.partialorder %v629, 0.0
        %vm647 = vcmp.gt.f32.partialorder %v630, 0.0
        %vm648 = vcmp.gt.f32.partialorder %v631, 0.0
        %vm649 = vcmp.gt.f32.partialorder %v632, 0.0
        %vm650 = vcmp.gt.f32.partialorder %v633, 0.0
        %vm651 = vcmp.gt.f32.partialorder %v634, 0.0
        %vm652 = vcmp.gt.f32.partialorder %v635, 0.0
        %vm653 = vcmp.gt.f32.partialorder %v636, 0.0
        %vm654 = vcmp.gt.f32.partialorder %v637, 0.0
        %vm655 = vcmp.gt.f32.partialorder %v638, 0.0
        %vm656 = vcmp.gt.f32.partialorder %v639, 0.0
        %vm657 = vcmp.gt.f32.partialorder %v640, 0.0
        %v658 = vstv %s641
        %v659 = vmul.f32 %v658, %v625
        %v660 = vmul.f32 %v658, %v626
        %v661 = vmul.f32 %v658, %v627
        %v662 = vmul.f32 %v658, %v628
        %v663 = vmul.f32 %v658, %v629
        %v664 = vmul.f32 %v658, %v630
        %v665 = vmul.f32 %v658, %v631
        %v666 = vmul.f32 %v658, %v632
        %v667 = vmul.f32 %v658, %v633
        %v668 = vmul.f32 %v658, %v634
        %v669 = vmul.f32 %v658, %v635
        %v670 = vmul.f32 %v658, %v636
        %v671 = vmul.f32 %v658, %v637
        %v672 = vmul.f32 %v658, %v638
        %v673 = vmul.f32 %v658, %v639
        %v674 = vmul.f32 %v658, %v640
        %v675 = vsel %vm642, %v625, %v659
        %v676 = vsel %vm643, %v626, %v660
        %v677 = vsel %vm644, %v627, %v661
        %v678 = vsel %vm645, %v628, %v662
        %v679 = vsel %vm646, %v629, %v663
        %v680 = vsel %vm647, %v630, %v664
        %v681 = vsel %vm648, %v631, %v665
        %v682 = vsel %vm649, %v632, %v666
        %v683 = vsel %vm650, %v633, %v667
        %v684 = vsel %vm651, %v634, %v668
        %v685 = vsel %vm652, %v635, %v669
        %v686 = vsel %vm653, %v636, %v670
        %v687 = vsel %vm654, %v637, %v671
        %v688 = vsel %vm655, %v638, %v672
        %v689 = vsel %vm656, %v639, %v673
        %v690 = vsel %vm657, %v640, %v674
        %v691 = vpack.c.bf16 %v676, %v675
        %v692 = vpack.c.bf16 %v678, %v677
        %v693 = vpack.c.bf16 %v680, %v679
        %v694 = vpack.c.bf16 %v682, %v681
        %v695 = vpack.c.bf16 %v684, %v683
        %v696 = vpack.c.bf16 %v686, %v685
        %v697 = vpack.c.bf16 %v688, %v687
        %v698 = vpack.c.bf16 %v690, %v689
        %v699 = vld [vmem:[%s3] sm:$0xf]
        %v700 = vld [vmem:[%s3 + $0x4] sm:$0xf]
        %v701 = vld [vmem:[%s3 + $0x8] sm:$0xf]
        %v702 = vld [vmem:[%s3 + $0xc] sm:$0xf]
        %v703 = vld [vmem:[%s3 + $0x10] sm:$0xf]
        %v704 = vld [vmem:[%s3 + $0x14] sm:$0xf]
        %v705 = vld [vmem:[%s3 + $0x18] sm:$0xf]
        %v706 = vld [vmem:[%s3 + $0x1c] sm:$0xf]
        %v707 = vld [vmem:[%s4] sm:$0x1]
        %v709 = vlaneseq
        %v710 = vshrl.u32 %v709, 7
        %v711 = vsub.s32 0, %v710
        %v712 = vrot.slane %v707, %v711
        %v722 = vunpack.c.l.b16 %v699
        %v723 = vunpack.c.l.b16 %v700
        %v724 = vunpack.c.l.b16 %v701
        %v725 = vunpack.c.l.b16 %v702
        %v726 = vunpack.c.l.b16 %v703
        %v727 = vunpack.c.l.b16 %v704
        %v728 = vunpack.c.l.b16 %v705
        %v729 = vunpack.c.l.b16 %v706
        %v730 = vpack.c.b16 %v723, %v722
        %v731 = vpack.c.b16 %v725, %v724
        %v732 = vpack.c.b16 %v727, %v726
        %v733 = vpack.c.b16 %v729, %v728
        %vm738 = vcmask 523264
        %v740 = vsel %vm738, %v691, 0
        %v743 = vsel %vm738, %v692, 0
        %v746 = vsel %vm738, %v693, 0
        %v749 = vsel %vm738, %v694, 0
        %v752 = vsel %vm738, %v695, 0
        %v755 = vsel %vm738, %v696, 0
        %v758 = vsel %vm738, %v697, 0
        %v761 = vsel %vm738, %v698, 0
        %763 = vmatprep.subr.bf16.mxu0 0
        %764 = vmatpush1.bf16.msra.mxu0 %v730
        %765 = vmatprep.subr.bf16.mxu0 0
        %766 = vmatpush1.bf16.msra.mxu0 %v731
        %767 = vmatprep.subr.bf16.mxu0 0
        %768 = vmatpush1.bf16.msra.mxu0 %v732
        %769 = vmatprep.subr.bf16.mxu0 0
        %770 = vmatpush1.bf16.msra.mxu0 %v733
        %771 = vmatprep.subr.bf16.mxu0 0
        %772 = vmatpush1.bf16.msra.mxu0 0
        %773 = vmatprep.subr.bf16.mxu0 0
        %774 = vmatpush1.bf16.msra.mxu0 0
        %775 = vmatprep.subr.bf16.mxu0 0
        %776 = vmatpush1.bf16.msra.mxu0 0
        %777 = vmatprep.subr.bf16.mxu0 0
        %778 = vmatpush1.bf16.msra.mxu0 0
        %779 = vmatprep.subr.bf16.mxu0 0
        %780 = vmatpush1.bf16.msra.mxu0 0
        %781 = vmatprep.subr.bf16.mxu0 0
        %782 = vmatpush1.bf16.msra.mxu0 0
        %783 = vmatprep.subr.bf16.mxu0 0
        %784 = vmatpush1.bf16.msra.mxu0 0
        %785 = vmatprep.subr.bf16.mxu0 0
        %786 = vmatpush1.bf16.msra.mxu0 0
        %787 = vmatprep.subr.bf16.mxu0 0
        %788 = vmatpush1.bf16.msra.mxu0 0
        %789 = vmatprep.subr.bf16.mxu0 0
        %790 = vmatpush1.bf16.msra.mxu0 0
        %791 = vmatprep.subr.bf16.mxu0 0
        %792 = vmatpush1.bf16.msra.mxu0 0
        %793 = vmatprep.subr.bf16.mxu0 0
        %794 = vmatpush1.bf16.msra.mxu0 0
        %795 = vmatprep.mubr.bf16.mxu0 0
        %796 = vmatmul.mubr.bf16.gmra.mrb[0].mxu0 %v740
        %v797 = vpop.f32.mrb[0].mxu0
        %v798 = vadd.f32 %v712, %v797
        %v799 = vpop.f32.mrb[0].mxu0
        %v800 = vpop.f32.mrb[0].mxu0
        %v801 = vadd.f32 %v712, %v800
        %v802 = vpop.f32.mrb[0].mxu0
        %803 = vmatprep.mubr.bf16.mxu0 0
        %804 = vmatmul.mubr.bf16.gmra.mrb[0].mxu0 %v743
        %v805 = vpop.f32.mrb[0].mxu0
        %v806 = vadd.f32 %v712, %v805
        %v807 = vpop.f32.mrb[0].mxu0
        %v808 = vpop.f32.mrb[0].mxu0
        %v809 = vadd.f32 %v712, %v808
        %v810 = vpop.f32.mrb[0].mxu0
        %811 = vmatprep.mubr.bf16.mxu0 0
        %812 = vmatmul.mubr.bf16.gmra.mrb[0].mxu0 %v746
        %v813 = vpop.f32.mrb[0].mxu0
        %v814 = vadd.f32 %v712, %v813
        %v815 = vpop.f32.mrb[0].mxu0
        %v816 = vpop.f32.mrb[0].mxu0
        %v817 = vadd.f32 %v712, %v816
        %v818 = vpop.f32.mrb[0].mxu0
        %819 = vmatprep.mubr.bf16.mxu0 0
        %820 = vmatmul.mubr.bf16.gmra.mrb[0].mxu0 %v749
        %v821 = vpop.f32.mrb[0].mxu0
        %v822 = vadd.f32 %v712, %v821
        %v823 = vpop.f32.mrb[0].mxu0
        %v824 = vpop.f32.mrb[0].mxu0
        %v825 = vadd.f32 %v712, %v824
        %v826 = vpop.f32.mrb[0].mxu0
        %827 = vmatprep.mubr.bf16.mxu0 0
        %828 = vmatmul.mubr.bf16.gmra.mrb[0].mxu0 %v752
        %v829 = vpop.f32.mrb[0].mxu0
        %v830 = vadd.f32 %v712, %v829
        %v831 = vpop.f32.mrb[0].mxu0
        %v832 = vpop.f32.mrb[0].mxu0
        %v833 = vadd.f32 %v712, %v832
        %v834 = vpop.f32.mrb[0].mxu0
        %835 = vmatprep.mubr.bf16.mxu0 0
        %836 = vmatmul.mubr.bf16.gmra.mrb[0].mxu0 %v755
        %v837 = vpop.f32.mrb[0].mxu0
        %v838 = vadd.f32 %v712, %v837
        %v839 = vpop.f32.mrb[0].mxu0
        %v840 = vpop.f32.mrb[0].mxu0
        %v841 = vadd.f32 %v712, %v840
        %v842 = vpop.f32.mrb[0].mxu0
        %843 = vmatprep.mubr.bf16.mxu0 0
        %844 = vmatmul.mubr.bf16.gmra.mrb[0].mxu0 %v758
        %v845 = vpop.f32.mrb[0].mxu0
        %v846 = vadd.f32 %v712, %v845
        %v847 = vpop.f32.mrb[0].mxu0
        %v848 = vpop.f32.mrb[0].mxu0
        %v849 = vadd.f32 %v712, %v848
        %v850 = vpop.f32.mrb[0].mxu0
        %851 = vmatprep.mubr.bf16.mxu0 0
        %852 = vmatmul.mubr.bf16.gmra.mrb[0].mxu0 %v761
        %v853 = vpop.f32.mrb[0].mxu0
        %v854 = vadd.f32 %v712, %v853
        %v855 = vpop.f32.mrb[0].mxu0
        %v856 = vpop.f32.mrb[0].mxu0
        %v857 = vadd.f32 %v712, %v856
        %v858 = vpop.f32.mrb[0].mxu0
        %859 = vdwg.mxu0
        %s860 = sld [smem:[#allocation6 + $0x1]]
        %vm861 = vcmp.gt.f32.partialorder %v798, 0.0
        %vm862 = vcmp.gt.f32.partialorder %v801, 0.0
        %vm863 = vcmp.gt.f32.partialorder %v806, 0.0
        %vm864 = vcmp.gt.f32.partialorder %v809, 0.0
        %vm865 = vcmp.gt.f32.partialorder %v814, 0.0
        %vm866 = vcmp.gt.f32.partialorder %v817, 0.0
        %vm867 = vcmp.gt.f32.partialorder %v822, 0.0
        %vm868 = vcmp.gt.f32.partialorder %v825, 0.0
        %vm869 = vcmp.gt.f32.partialorder %v830, 0.0
        %vm870 = vcmp.gt.f32.partialorder %v833, 0.0
        %vm871 = vcmp.gt.f32.partialorder %v838, 0.0
        %vm872 = vcmp.gt.f32.partialorder %v841, 0.0
        %vm873 = vcmp.gt.f32.partialorder %v846, 0.0
        %vm874 = vcmp.gt.f32.partialorder %v849, 0.0
        %vm875 = vcmp.gt.f32.partialorder %v854, 0.0
        %vm876 = vcmp.gt.f32.partialorder %v857, 0.0
        %v877 = vstv %s860
        %v878 = vmul.f32 %v877, %v798
        %v879 = vmul.f32 %v877, %v801
        %v880 = vmul.f32 %v877, %v806
        %v881 = vmul.f32 %v877, %v809
        %v882 = vmul.f32 %v877, %v814
        %v883 = vmul.f32 %v877, %v817
        %v884 = vmul.f32 %v877, %v822
        %v885 = vmul.f32 %v877, %v825
        %v886 = vmul.f32 %v877, %v830
        %v887 = vmul.f32 %v877, %v833
        %v888 = vmul.f32 %v877, %v838
        %v889 = vmul.f32 %v877, %v841
        %v890 = vmul.f32 %v877, %v846
        %v891 = vmul.f32 %v877, %v849
        %v892 = vmul.f32 %v877, %v854
        %v893 = vmul.f32 %v877, %v857
        %v894 = vsel %vm861, %v798, %v878
        %v895 = vsel %vm862, %v801, %v879
        %v896 = vsel %vm863, %v806, %v880
        %v897 = vsel %vm864, %v809, %v881
        %v898 = vsel %vm865, %v814, %v882
        %v899 = vsel %vm866, %v817, %v883
        %v900 = vsel %vm867, %v822, %v884
        %v901 = vsel %vm868, %v825, %v885
        %v902 = vsel %vm869, %v830, %v886
        %v903 = vsel %vm870, %v833, %v887
        %v904 = vsel %vm871, %v838, %v888
        %v905 = vsel %vm872, %v841, %v889
        %v906 = vsel %vm873, %v846, %v890
        %v907 = vsel %vm874, %v849, %v891
        %v908 = vsel %vm875, %v854, %v892
        %v909 = vsel %vm876, %v857, %v893
        %v910 = vpack.c.bf16 %v895, %v894
        %v911 = vpack.c.bf16 %v897, %v896
        %v912 = vpack.c.bf16 %v899, %v898
        %v913 = vpack.c.bf16 %v901, %v900
        %v914 = vpack.c.bf16 %v903, %v902
        %v915 = vpack.c.bf16 %v905, %v904
        %v916 = vpack.c.bf16 %v907, %v906
        %v917 = vpack.c.bf16 %v909, %v908
        %v918 = vld [vmem:[#allocation2] sm:$0xff]
        %v919 = vld [vmem:[#allocation2 + $0x20] sm:$0xff]
        %v920 = vld [vmem:[#allocation2 + $0x40] sm:$0xff]
        %v921 = vld [vmem:[#allocation2 + $0x60] sm:$0xff]
        %v922 = vld [vmem:[#allocation2 + $0x80] sm:$0xff]
        %v923 = vld [vmem:[#allocation2 + $0xa0] sm:$0xff]
        %v924 = vld [vmem:[#allocation2 + $0xc0] sm:$0xff]
        %v925 = vld [vmem:[#allocation2 + $0xe0] sm:$0xff]
        %v926 = vld [vmem:[#allocation2 + $0x100] sm:$0xff]
        %v927 = vld [vmem:[#allocation2 + $0x120] sm:$0xff]
        %v928 = vld [vmem:[#allocation2 + $0x140] sm:$0xff]
        %v929 = vld [vmem:[#allocation2 + $0x160] sm:$0xff]
        %v930 = vld [vmem:[#allocation2 + $0x180] sm:$0xff]
        %v931 = vld [vmem:[#allocation2 + $0x1a0] sm:$0xff]
        %v932 = vld [vmem:[#allocation2 + $0x1c0] sm:$0xff]
        %v933 = vld [vmem:[#allocation2 + $0x1e0] sm:$0xff]
        %v950 = vunpack.c.l.b16 %v918
        %v951 = vunpack.c.h.b16 %v918
        %v952 = vunpack.c.l.b16 %v919
        %v953 = vunpack.c.h.b16 %v919
        %v954 = vunpack.c.l.b16 %v920
        %v955 = vunpack.c.h.b16 %v920
        %v956 = vunpack.c.l.b16 %v921
        %v957 = vunpack.c.h.b16 %v921
        %v958 = vunpack.c.l.b16 %v922
        %v959 = vunpack.c.h.b16 %v922
        %v960 = vunpack.c.l.b16 %v923
        %v961 = vunpack.c.h.b16 %v923
        %v962 = vunpack.c.l.b16 %v924
        %v963 = vunpack.c.h.b16 %v924
        %v964 = vunpack.c.l.b16 %v925
        %v965 = vunpack.c.h.b16 %v925
        %v966 = vunpack.c.l.b16 %v926
        %v967 = vunpack.c.h.b16 %v926
        %v968 = vunpack.c.l.b16 %v927
        %v969 = vunpack.c.h.b16 %v927
        %v970 = vunpack.c.l.b16 %v928
        %v971 = vunpack.c.h.b16 %v928
        %v972 = vunpack.c.l.b16 %v929
        %v973 = vunpack.c.h.b16 %v929
        %v974 = vunpack.c.l.b16 %v930
        %v975 = vunpack.c.h.b16 %v930
        %v976 = vunpack.c.l.b16 %v931
        %v977 = vunpack.c.h.b16 %v931
        %v978 = vunpack.c.l.b16 %v932
        %v979 = vunpack.c.h.b16 %v932
        %v980 = vunpack.c.l.b16 %v933
        %v981 = vunpack.c.h.b16 %v933
        %v982 = vpack.c.b16 %v952, %v950
        %v983 = vpack.c.b16 %v953, %v951
        %v984 = vpack.c.b16 %v956, %v954
        %v985 = vpack.c.b16 %v957, %v955
        %v986 = vpack.c.b16 %v960, %v958
        %v987 = vpack.c.b16 %v961, %v959
        %v988 = vpack.c.b16 %v964, %v962
        %v989 = vpack.c.b16 %v965, %v963
        %v990 = vpack.c.b16 %v968, %v966
        %v991 = vpack.c.b16 %v969, %v967
        %v992 = vpack.c.b16 %v972, %v970
        %v993 = vpack.c.b16 %v973, %v971
        %v994 = vpack.c.b16 %v976, %v974
        %v995 = vpack.c.b16 %v977, %v975
        %v996 = vpack.c.b16 %v980, %v978
        %v997 = vpack.c.b16 %v981, %v979
        %1014 = vmatprep.subr.bf16.mxu0 %v983
        %1015 = vmatpush1.bf16.msra.mxu0 %v982
        %1016 = vmatprep.subr.bf16.mxu0 %v985
        %1017 = vmatpush1.bf16.msra.mxu0 %v984
        %1018 = vmatprep.subr.bf16.mxu0 %v987
        %1019 = vmatpush1.bf16.msra.mxu0 %v986
        %1020 = vmatprep.subr.bf16.mxu0 %v989
        %1021 = vmatpush1.bf16.msra.mxu0 %v988
        %1022 = vmatprep.subr.bf16.mxu0 %v991
        %1023 = vmatpush1.bf16.msra.mxu0 %v990
        %1024 = vmatprep.subr.bf16.mxu0 %v993
        %1025 = vmatpush1.bf16.msra.mxu0 %v992
        %1026 = vmatprep.subr.bf16.mxu0 %v995
        %1027 = vmatpush1.bf16.msra.mxu0 %v994
        %1028 = vmatprep.subr.bf16.mxu0 %v997
        %1029 = vmatpush1.bf16.msra.mxu0 %v996
        %1030 = vmatprep.subr.bf16.mxu0 0
        %1031 = vmatpush1.bf16.msra.mxu0 0
        %1032 = vmatprep.subr.bf16.mxu0 0
        %1033 = vmatpush1.bf16.msra.mxu0 0
        %1034 = vmatprep.subr.bf16.mxu0 0
        %1035 = vmatpush1.bf16.msra.mxu0 0
        %1036 = vmatprep.subr.bf16.mxu0 0
        %1037 = vmatpush1.bf16.msra.mxu0 0
        %1038 = vmatprep.subr.bf16.mxu0 0
        %1039 = vmatpush1.bf16.msra.mxu0 0
        %1040 = vmatprep.subr.bf16.mxu0 0
        %1041 = vmatpush1.bf16.msra.mxu0 0
        %1042 = vmatprep.subr.bf16.mxu0 0
        %1043 = vmatpush1.bf16.msra.mxu0 0
        %1044 = vmatprep.subr.bf16.mxu0 0
        %1045 = vmatpush1.bf16.msra.mxu0 0
        %1046 = vmatprep.mubr.bf16.mxu0 0
        %1047 = vmatmul.mubr.bf16.gmra.mrb[0].mxu0 %v910
        %v1048 = vpop.f32.mrb[0].mxu0
        %v1049 = vadd.f32 0.0, %v1048
        %v1050 = vpop.f32.mrb[0].mxu0
        %v1051 = vadd.f32 0.0, %v1050
        %v1052 = vpop.f32.mrb[0].mxu0
        %v1053 = vadd.f32 0.0, %v1052
        %v1054 = vpop.f32.mrb[0].mxu0
        %v1055 = vadd.f32 0.0, %v1054
        %1056 = vmatprep.mubr.bf16.mxu0 0
        %1057 = vmatmul.mubr.bf16.gmra.mrb[0].mxu0 %v911
        %v1058 = vpop.f32.mrb[0].mxu0
        %v1059 = vadd.f32 0.0, %v1058
        %v1060 = vpop.f32.mrb[0].mxu0
        %v1061 = vadd.f32 0.0, %v1060
        %v1062 = vpop.f32.mrb[0].mxu0
        %v1063 = vadd.f32 0.0, %v1062
        %v1064 = vpop.f32.mrb[0].mxu0
        %v1065 = vadd.f32 0.0, %v1064
        %1066 = vmatprep.mubr.bf16.mxu0 0
        %1067 = vmatmul.mubr.bf16.gmra.mrb[0].mxu0 %v912
        %v1068 = vpop.f32.mrb[0].mxu0
        %v1069 = vadd.f32 0.0, %v1068
        %v1070 = vpop.f32.mrb[0].mxu0
        %v1071 = vadd.f32 0.0, %v1070
        %v1072 = vpop.f32.mrb[0].mxu0
        %v1073 = vadd.f32 0.0, %v1072
        %v1074 = vpop.f32.mrb[0].mxu0
        %v1075 = vadd.f32 0.0, %v1074
        %1076 = vmatprep.mubr.bf16.mxu0 0
        %1077 = vmatmul.mubr.bf16.gmra.mrb[0].mxu0 %v913
        %v1078 = vpop.f32.mrb[0].mxu0
        %v1079 = vadd.f32 0.0, %v1078
        %v1080 = vpop.f32.mrb[0].mxu0
        %v1081 = vadd.f32 0.0, %v1080
        %v1082 = vpop.f32.mrb[0].mxu0
        %v1083 = vadd.f32 0.0, %v1082
        %v1084 = vpop.f32.mrb[0].mxu0
        %v1085 = vadd.f32 0.0, %v1084
        %1086 = vmatprep.mubr.bf16.mxu0 0
        %1087 = vmatmul.mubr.bf16.gmra.mrb[0].mxu0 %v914
        %v1088 = vpop.f32.mrb[0].mxu0
        %v1089 = vadd.f32 0.0, %v1088
        %v1090 = vpop.f32.mrb[0].mxu0
        %v1091 = vadd.f32 0.0, %v1090
        %v1092 = vpop.f32.mrb[0].mxu0
        %v1093 = vadd.f32 0.0, %v1092
        %v1094 = vpop.f32.mrb[0].mxu0
        %v1095 = vadd.f32 0.0, %v1094
        %1096 = vmatprep.mubr.bf16.mxu0 0
        %1097 = vmatmul.mubr.bf16.gmra.mrb[0].mxu0 %v915
        %v1098 = vpop.f32.mrb[0].mxu0
        %v1099 = vadd.f32 0.0, %v1098
        %v1100 = vpop.f32.mrb[0].mxu0
        %v1101 = vadd.f32 0.0, %v1100
        %v1102 = vpop.f32.mrb[0].mxu0
        %v1103 = vadd.f32 0.0, %v1102
        %v1104 = vpop.f32.mrb[0].mxu0
        %v1105 = vadd.f32 0.0, %v1104
        %1106 = vmatprep.mubr.bf16.mxu0 0
        %1107 = vmatmul.mubr.bf16.gmra.mrb[0].mxu0 %v916
        %v1108 = vpop.f32.mrb[0].mxu0
        %v1109 = vadd.f32 0.0, %v1108
        %v1110 = vpop.f32.mrb[0].mxu0
        %v1111 = vadd.f32 0.0, %v1110
        %v1112 = vpop.f32.mrb[0].mxu0
        %v1113 = vadd.f32 0.0, %v1112
        %v1114 = vpop.f32.mrb[0].mxu0
        %v1115 = vadd.f32 0.0, %v1114
        %1116 = vmatprep.mubr.bf16.mxu0 0
        %1117 = vmatmul.mubr.bf16.gmra.mrb[0].mxu0 %v917
        %v1118 = vpop.f32.mrb[0].mxu0
        %v1119 = vadd.f32 0.0, %v1118
        %v1120 = vpop.f32.mrb[0].mxu0
        %v1121 = vadd.f32 0.0, %v1120
        %v1122 = vpop.f32.mrb[0].mxu0
        %v1123 = vadd.f32 0.0, %v1122
        %v1124 = vpop.f32.mrb[0].mxu0
        %v1125 = vadd.f32 0.0, %v1124
        %1126 = vdwg.mxu0
        %v1127 = vsel %vm427, 1, 0
        %v1128 = vsel %vm428, 1, 0
        %v1129 = vsel %vm429, 1, 0
        %v1130 = vsel %vm430, 1, 0
        %v1131 = vsel %vm431, 1, 0
        %v1132 = vsel %vm432, 1, 0
        %v1133 = vsel %vm433, 1, 0
        %v1134 = vsel %vm434, 1, 0
        %v1135 = vsel %vm435, 1, 0
        %v1136 = vsel %vm436, 1, 0
        %v1137 = vsel %vm437, 1, 0
        %v1138 = vsel %vm438, 1, 0
        %v1139 = vsel %vm439, 1, 0
        %v1140 = vsel %vm440, 1, 0
        %v1141 = vsel %vm441, 1, 0
        %v1142 = vsel %vm442, 1, 0
        %vm1143 = vcmp.eq.s32.totalorder %v1127, 1
        %vm1144 = vcmp.eq.s32.totalorder %v1128, 1
        %vm1145 = vcmp.eq.s32.totalorder %v1129, 1
        %vm1146 = vcmp.eq.s32.totalorder %v1130, 1
        %vm1147 = vcmp.eq.s32.totalorder %v1131, 1
        %vm1148 = vcmp.eq.s32.totalorder %v1132, 1
        %vm1149 = vcmp.eq.s32.totalorder %v1133, 1
        %vm1150 = vcmp.eq.s32.totalorder %v1134, 1
        %vm1151 = vcmp.eq.s32.totalorder %v1135, 1
        %vm1152 = vcmp.eq.s32.totalorder %v1136, 1
        %vm1153 = vcmp.eq.s32.totalorder %v1137, 1
        %vm1154 = vcmp.eq.s32.totalorder %v1138, 1
        %vm1155 = vcmp.eq.s32.totalorder %v1139, 1
        %vm1156 = vcmp.eq.s32.totalorder %v1140, 1
        %vm1157 = vcmp.eq.s32.totalorder %v1141, 1
        %vm1158 = vcmp.eq.s32.totalorder %v1142, 1
        %v1159 = vsel %vm1143, %v1049, -inf
        %v1160 = vsel %vm1143, %v1051, -inf
        %v1161 = vsel %vm1144, %v1053, -inf
        %v1162 = vsel %vm1144, %v1055, -inf
        %v1163 = vsel %vm1145, %v1059, -inf
        %v1164 = vsel %vm1145, %v1061, -inf
        %v1165 = vsel %vm1146, %v1063, -inf
        %v1166 = vsel %vm1146, %v1065, -inf
        %v1167 = vsel %vm1147, %v1069, -inf
        %v1168 = vsel %vm1147, %v1071, -inf
        %v1169 = vsel %vm1148, %v1073, -inf
        %v1170 = vsel %vm1148, %v1075, -inf
        %v1171 = vsel %vm1149, %v1079, -inf
        %v1172 = vsel %vm1149, %v1081, -inf
        %v1173 = vsel %vm1150, %v1083, -inf
        %v1174 = vsel %vm1150, %v1085, -inf
        %v1175 = vsel %vm1151, %v1089, -inf
        %v1176 = vsel %vm1151, %v1091, -inf
        %v1177 = vsel %vm1152, %v1093, -inf
        %v1178 = vsel %vm1152, %v1095, -inf
        %v1179 = vsel %vm1153, %v1099, -inf
        %v1180 = vsel %vm1153, %v1101, -inf
        %v1181 = vsel %vm1154, %v1103, -inf
        %v1182 = vsel %vm1154, %v1105, -inf
        %v1183 = vsel %vm1155, %v1109, -inf
        %v1184 = vsel %vm1155, %v1111, -inf
        %v1185 = vsel %vm1156, %v1113, -inf
        %v1186 = vsel %vm1156, %v1115, -inf
        %v1187 = vsel %vm1157, %v1119, -inf
        %v1188 = vsel %vm1157, %v1121, -inf
        %v1189 = vsel %vm1158, %v1123, -inf
        %v1190 = vsel %vm1158, %v1125, -inf
        %v1191 = vmax.f32 %v1159, %v1163
        %v1192 = vmax.f32 %v1161, %v1165
        %v1193 = vmax.f32 %v1191, %v1167
        %v1194 = vmax.f32 %v1192, %v1169
        %v1195 = vmax.f32 %v1193, %v1171
        %v1196 = vmax.f32 %v1194, %v1173
        %v1197 = vmax.f32 %v1195, %v1175
        %v1198 = vmax.f32 %v1196, %v1177
        %v1199 = vmax.f32 %v1197, %v1179
        %v1200 = vmax.f32 %v1198, %v1181
        %v1201 = vmax.f32 %v1199, %v1183
        %v1202 = vmax.f32 %v1200, %v1185
        %v1203 = vmax.f32 %v1201, %v1187
        %v1204 = vmax.f32 %v1202, %v1189
        %v1205 = vmax.f32 %v1203, %v1204
        %v1206 = vrot.slane %v1205, 4
        %v1207 = vmax.f32 %v1205, %v1206
        %v1208 = vrot.slane %v1207, 2
        %v1209 = vmax.f32 %v1207, %v1208
        %v1210 = vrot.slane %v1209, 1
        %v1211 = vmax.f32 %v1209, %v1210
        %v1212 = vmax.f32 %v1160, %v1164
        %v1213 = vmax.f32 %v1162, %v1166
        %v1214 = vmax.f32 %v1212, %v1168
        %v1215 = vmax.f32 %v1213, %v1170
        %v1216 = vmax.f32 %v1214, %v1172
        %v1217 = vmax.f32 %v1215, %v1174
        %v1218 = vmax.f32 %v1216, %v1176
        %v1219 = vmax.f32 %v1217, %v1178
        %v1220 = vmax.f32 %v1218, %v1180
        %v1221 = vmax.f32 %v1219, %v1182
        %v1222 = vmax.f32 %v1220, %v1184
        %v1223 = vmax.f32 %v1221, %v1186
        %v1224 = vmax.f32 %v1222, %v1188
        %v1225 = vmax.f32 %v1223, %v1190
        %v1226 = vmax.f32 %v1224, %v1225
        %v1227 = vrot.slane %v1226, 4
        %v1228 = vmax.f32 %v1226, %v1227
        %v1229 = vrot.slane %v1228, 2
        %v1230 = vmax.f32 %v1228, %v1229
        %v1231 = vrot.slane %v1230, 1
        %v1232 = vmax.f32 %v1230, %v1231
        %v1233 = vld [vmem:[%s369] sm:$0x3]
        %v1236 = vcombine.low %v1211, %v1232
        %v1238 = vunpack.c.l.s4 1966171168
        %v1239 = vunpack.c.0.s8 %v1238
        %v1240 = vlaneseq
        %v1241 = vshrl.u32 %v1240, 7
        %v1242 = vsub.s32 %v1239, %v1241
        %v1243 = vrot.slane %v1236, %v1242
        %v1245 = vunpack.c.l.s4 1966171168
        %v1246 = vunpack.c.0.s8 %v1245
        %v1247 = vlaneseq
        %v1248 = vshrl.u32 %v1247, 7
        %v1249 = vsub.s32 %v1246, %v1248
        %v1250 = vrot.slane %v1243, %v1249
        %v1252 = vmax.f32 %v1233, %v1250
        %v1253 = vlaneseq
        %vm1254 = vcmp.ge.s32.totalorder %v1253, 0
        %vm1255 = vcmp.lt.s32.totalorder %v1253, 256
        %vm1256 = vmand %vm1254, %vm1255
        %1257 = vst.msk [vmem:[%s369] sm:$0x3] %vm1256, %v1252
        %v1258 = vld [vmem:[#allocation2 + $0x8] sm:$0xff]
        %v1259 = vld [vmem:[#allocation2 + $0x28] sm:$0xff]
        %v1260 = vld [vmem:[#allocation2 + $0x48] sm:$0xff]
        %v1261 = vld [vmem:[#allocation2 + $0x68] sm:$0xff]
        %v1262 = vld [vmem:[#allocation2 + $0x88] sm:$0xff]
        %v1263 = vld [vmem:[#allocation2 + $0xa8] sm:$0xff]
        %v1264 = vld [vmem:[#allocation2 + $0xc8] sm:$0xff]
        %v1265 = vld [vmem:[#allocation2 + $0xe8] sm:$0xff]
        %v1266 = vld [vmem:[#allocation2 + $0x108] sm:$0xff]
        %v1267 = vld [vmem:[#allocation2 + $0x128] sm:$0xff]
        %v1268 = vld [vmem:[#allocation2 + $0x148] sm:$0xff]
        %v1269 = vld [vmem:[#allocation2 + $0x168] sm:$0xff]
        %v1270 = vld [vmem:[#allocation2 + $0x188] sm:$0xff]
        %v1271 = vld [vmem:[#allocation2 + $0x1a8] sm:$0xff]
        %v1272 = vld [vmem:[#allocation2 + $0x1c8] sm:$0xff]
        %v1273 = vld [vmem:[#allocation2 + $0x1e8] sm:$0xff]
        %v1290 = vunpack.c.l.b16 %v1258
        %v1291 = vunpack.c.h.b16 %v1258
        %v1292 = vunpack.c.l.b16 %v1259
        %v1293 = vunpack.c.h.b16 %v1259
        %v1294 = vunpack.c.l.b16 %v1260
        %v1295 = vunpack.c.h.b16 %v1260
        %v1296 = vunpack.c.l.b16 %v1261
        %v1297 = vunpack.c.h.b16 %v1261
        %v1298 = vunpack.c.l.b16 %v1262
        %v1299 = vunpack.c.h.b16 %v1262
        %v1300 = vunpack.c.l.b16 %v1263
        %v1301 = vunpack.c.h.b16 %v1263
        %v1302 = vunpack.c.l.b16 %v1264
        %v1303 = vunpack.c.h.b16 %v1264
        %v1304 = vunpack.c.l.b16 %v1265
        %v1305 = vunpack.c.h.b16 %v1265
        %v1306 = vunpack.c.l.b16 %v1266
        %v1307 = vunpack.c.h.b16 %v1266
        %v1308 = vunpack.c.l.b16 %v1267
        %v1309 = vunpack.c.h.b16 %v1267
        %v1310 = vunpack.c.l.b16 %v1268
        %v1311 = vunpack.c.h.b16 %v1268
        %v1312 = vunpack.c.l.b16 %v1269
        %v1313 = vunpack.c.h.b16 %v1269
        %v1314 = vunpack.c.l.b16 %v1270
        %v1315 = vunpack.c.h.b16 %v1270
        %v1316 = vunpack.c.l.b16 %v1271
        %v1317 = vunpack.c.h.b16 %v1271
        %v1318 = vunpack.c.l.b16 %v1272
        %v1319 = vunpack.c.h.b16 %v1272
        %v1320 = vunpack.c.l.b16 %v1273
        %v1321 = vunpack.c.h.b16 %v1273
        %v1322 = vpack.c.b16 %v1292, %v1290
        %v1323 = vpack.c.b16 %v1293, %v1291
        %v1324 = vpack.c.b16 %v1296, %v1294
        %v1325 = vpack.c.b16 %v1297, %v1295
        %v1326 = vpack.c.b16 %v1300, %v1298
        %v1327 = vpack.c.b16 %v1301, %v1299
        %v1328 = vpack.c.b16 %v1304, %v1302
        %v1329 = vpack.c.b16 %v1305, %v1303
        %v1330 = vpack.c.b16 %v1308, %v1306
        %v1331 = vpack.c.b16 %v1309, %v1307
        %v1332 = vpack.c.b16 %v1312, %v1310
        %v1333 = vpack.c.b16 %v1313, %v1311
        %v1334 = vpack.c.b16 %v1316, %v1314
        %v1335 = vpack.c.b16 %v1317, %v1315
        %v1336 = vpack.c.b16 %v1320, %v1318
        %v1337 = vpack.c.b16 %v1321, %v1319
        %1354 = vmatprep.subr.bf16.mxu0 %v1323
        %1355 = vmatpush1.bf16.msra.mxu0 %v1322
        %1356 = vmatprep.subr.bf16.mxu0 %v1325
        %1357 = vmatpush1.bf16.msra.mxu0 %v1324
        %1358 = vmatprep.subr.bf16.mxu0 %v1327
        %1359 = vmatpush1.bf16.msra.mxu0 %v1326
        %1360 = vmatprep.subr.bf16.mxu0 %v1329
        %1361 = vmatpush1.bf16.msra.mxu0 %v1328
        %1362 = vmatprep.subr.bf16.mxu0 %v1331
        %1363 = vmatpush1.bf16.msra.mxu0 %v1330
        %1364 = vmatprep.subr.bf16.mxu0 %v1333
        %1365 = vmatpush1.bf16.msra.mxu0 %v1332
        %1366 = vmatprep.subr.bf16.mxu0 %v1335
        %1367 = vmatpush1.bf16.msra.mxu0 %v1334
        %1368 = vmatprep.subr.bf16.mxu0 %v1337
        %1369 = vmatpush1.bf16.msra.mxu0 %v1336
        %1370 = vmatprep.subr.bf16.mxu0 0
        %1371 = vmatpush1.bf16.msra.mxu0 0
        %1372 = vmatprep.subr.bf16.mxu0 0
        %1373 = vmatpush1.bf16.msra.mxu0 0
        %1374 = vmatprep.subr.bf16.mxu0 0
        %1375 = vmatpush1.bf16.msra.mxu0 0
        %1376 = vmatprep.subr.bf16.mxu0 0
        %1377 = vmatpush1.bf16.msra.mxu0 0
        %1378 = vmatprep.subr.bf16.mxu0 0
        %1379 = vmatpush1.bf16.msra.mxu0 0
        %1380 = vmatprep.subr.bf16.mxu0 0
        %1381 = vmatpush1.bf16.msra.mxu0 0
        %1382 = vmatprep.subr.bf16.mxu0 0
        %1383 = vmatpush1.bf16.msra.mxu0 0
        %1384 = vmatprep.subr.bf16.mxu0 0
        %1385 = vmatpush1.bf16.msra.mxu0 0
        %1386 = vmatprep.mubr.bf16.mxu0 0
        %1387 = vmatmul.mubr.bf16.gmra.mrb[0].mxu0 %v910
        %v1388 = vpop.f32.mrb[0].mxu0
        %v1389 = vadd.f32 0.0, %v1388
        %v1390 = vpop.f32.mrb[0].mxu0
        %v1391 = vadd.f32 0.0, %v1390
        %v1392 = vpop.f32.mrb[0].mxu0
        %v1393 = vadd.f32 0.0, %v1392
        %v1394 = vpop.f32.mrb[0].mxu0
        %v1395 = vadd.f32 0.0, %v1394
        %1396 = vmatprep.mubr.bf16.mxu0 0
        %1397 = vmatmul.mubr.bf16.gmra.mrb[0].mxu0 %v911
        %v1398 = vpop.f32.mrb[0].mxu0
        %v1399 = vadd.f32 0.0, %v1398
        %v1400 = vpop.f32.mrb[0].mxu0
        %v1401 = vadd.f32 0.0, %v1400
        %v1402 = vpop.f32.mrb[0].mxu0
        %v1403 = vadd.f32 0.0, %v1402
        %v1404 = vpop.f32.mrb[0].mxu0
        %v1405 = vadd.f32 0.0, %v1404
        %1406 = vmatprep.mubr.bf16.mxu0 0
        %1407 = vmatmul.mubr.bf16.gmra.mrb[0].mxu0 %v912
        %v1408 = vpop.f32.mrb[0].mxu0
        %v1409 = vadd.f32 0.0, %v1408
        %v1410 = vpop.f32.mrb[0].mxu0
        %v1411 = vadd.f32 0.0, %v1410
        %v1412 = vpop.f32.mrb[0].mxu0
        %v1413 = vadd.f32 0.0, %v1412
        %v1414 = vpop.f32.mrb[0].mxu0
        %v1415 = vadd.f32 0.0, %v1414
        %1416 = vmatprep.mubr.bf16.mxu0 0
        %1417 = vmatmul.mubr.bf16.gmra.mrb[0].mxu0 %v913
        %v1418 = vpop.f32.mrb[0].mxu0
        %v1419 = vadd.f32 0.0, %v1418
        %v1420 = vpop.f32.mrb[0].mxu0
        %v1421 = vadd.f32 0.0, %v1420
        %v1422 = vpop.f32.mrb[0].mxu0
        %v1423 = vadd.f32 0.0, %v1422
        %v1424 = vpop.f32.mrb[0].mxu0
        %v1425 = vadd.f32 0.0, %v1424
        %1426 = vmatprep.mubr.bf16.mxu0 0
        %1427 = vmatmul.mubr.bf16.gmra.mrb[0].mxu0 %v914
        %v1428 = vpop.f32.mrb[0].mxu0
        %v1429 = vadd.f32 0.0, %v1428
        %v1430 = vpop.f32.mrb[0].mxu0
        %v1431 = vadd.f32 0.0, %v1430
        %v1432 = vpop.f32.mrb[0].mxu0
        %v1433 = vadd.f32 0.0, %v1432
        %v1434 = vpop.f32.mrb[0].mxu0
        %v1435 = vadd.f32 0.0, %v1434
        %1436 = vmatprep.mubr.bf16.mxu0 0
        %1437 = vmatmul.mubr.bf16.gmra.mrb[0].mxu0 %v915
        %v1438 = vpop.f32.mrb[0].mxu0
        %v1439 = vadd.f32 0.0, %v1438
        %v1440 = vpop.f32.mrb[0].mxu0
        %v1441 = vadd.f32 0.0, %v1440
        %v1442 = vpop.f32.mrb[0].mxu0
        %v1443 = vadd.f32 0.0, %v1442
        %v1444 = vpop.f32.mrb[0].mxu0
        %v1445 = vadd.f32 0.0, %v1444
        %1446 = vmatprep.mubr.bf16.mxu0 0
        %1447 = vmatmul.mubr.bf16.gmra.mrb[0].mxu0 %v916
        %v1448 = vpop.f32.mrb[0].mxu0
        %v1449 = vadd.f32 0.0, %v1448
        %v1450 = vpop.f32.mrb[0].mxu0
        %v1451 = vadd.f32 0.0, %v1450
        %v1452 = vpop.f32.mrb[0].mxu0
        %v1453 = vadd.f32 0.0, %v1452
        %v1454 = vpop.f32.mrb[0].mxu0
        %v1455 = vadd.f32 0.0, %v1454
        %1456 = vmatprep.mubr.bf16.mxu0 0
        %1457 = vmatmul.mubr.bf16.gmra.mrb[0].mxu0 %v917
        %v1458 = vpop.f32.mrb[0].mxu0
        %v1459 = vadd.f32 0.0, %v1458
        %v1460 = vpop.f32.mrb[0].mxu0
        %v1461 = vadd.f32 0.0, %v1460
        %v1462 = vpop.f32.mrb[0].mxu0
        %v1463 = vadd.f32 0.0, %v1462
        %v1464 = vpop.f32.mrb[0].mxu0
        %v1465 = vadd.f32 0.0, %v1464
        %1466 = vdwg.mxu0
        %v1467 = vsel %vm1143, %v1389, -inf
        %v1468 = vsel %vm1143, %v1391, -inf
        %v1469 = vsel %vm1144, %v1393, -inf
        %v1470 = vsel %vm1144, %v1395, -inf
        %v1471 = vsel %vm1145, %v1399, -inf
        %v1472 = vsel %vm1145, %v1401, -inf
        %v1473 = vsel %vm1146, %v1403, -inf
        %v1474 = vsel %vm1146, %v1405, -inf
        %v1475 = vsel %vm1147, %v1409, -inf
        %v1476 = vsel %vm1147, %v1411, -inf
        %v1477 = vsel %vm1148, %v1413, -inf
        %v1478 = vsel %vm1148, %v1415, -inf
        %v1479 = vsel %vm1149, %v1419, -inf
        %v1480 = vsel %vm1149, %v1421, -inf
        %v1481 = vsel %vm1150, %v1423, -inf
        %v1482 = vsel %vm1150, %v1425, -inf
        %v1483 = vsel %vm1151, %v1429, -inf
        %v1484 = vsel %vm1151, %v1431, -inf
        %v1485 = vsel %vm1152, %v1433, -inf
        %v1486 = vsel %vm1152, %v1435, -inf
        %v1487 = vsel %vm1153, %v1439, -inf
        %v1488 = vsel %vm1153, %v1441, -inf
        %v1489 = vsel %vm1154, %v1443, -inf
        %v1490 = vsel %vm1154, %v1445, -inf
        %v1491 = vsel %vm1155, %v1449, -inf
        %v1492 = vsel %vm1155, %v1451, -inf
        %v1493 = vsel %vm1156, %v1453, -inf
        %v1494 = vsel %vm1156, %v1455, -inf
        %v1495 = vsel %vm1157, %v1459, -inf
        %v1496 = vsel %vm1157, %v1461, -inf
        %v1497 = vsel %vm1158, %v1463, -inf
        %v1498 = vsel %vm1158, %v1465, -inf
        %v1499 = vmax.f32 %v1467, %v1471
        %v1500 = vmax.f32 %v1469, %v1473
        %v1501 = vmax.f32 %v1499, %v1475
        %v1502 = vmax.f32 %v1500, %v1477
        %v1503 = vmax.f32 %v1501, %v1479
        %v1504 = vmax.f32 %v1502, %v1481
        %v1505 = vmax.f32 %v1503, %v1483
        %v1506 = vmax.f32 %v1504, %v1485
        %v1507 = vmax.f32 %v1505, %v1487
        %v1508 = vmax.f32 %v1506, %v1489
        %v1509 = vmax.f32 %v1507, %v1491
        %v1510 = vmax.f32 %v1508, %v1493
        %v1511 = vmax.f32 %v1509, %v1495
        %v1512 = vmax.f32 %v1510, %v1497
        %v1513 = vmax.f32 %v1511, %v1512
        %v1514 = vrot.slane %v1513, 4
        %v1515 = vmax.f32 %v1513, %v1514
        %v1516 = vrot.slane %v1515, 2
        %v1517 = vmax.f32 %v1515, %v1516
        %v1518 = vrot.slane %v1517, 1
        %v1519 = vmax.f32 %v1517, %v1518
        %v1520 = vmax.f32 %v1468, %v1472
        %v1521 = vmax.f32 %v1470, %v1474
        %v1522 = vmax.f32 %v1520, %v1476
        %v1523 = vmax.f32 %v1521, %v1478
        %v1524 = vmax.f32 %v1522, %v1480
        %v1525 = vmax.f32 %v1523, %v1482
        %v1526 = vmax.f32 %v1524, %v1484
        %v1527 = vmax.f32 %v1525, %v1486
        %v1528 = vmax.f32 %v1526, %v1488
        %v1529 = vmax.f32 %v1527, %v1490
        %v1530 = vmax.f32 %v1528, %v1492
        %v1531 = vmax.f32 %v1529, %v1494
        %v1532 = vmax.f32 %v1530, %v1496
        %v1533 = vmax.f32 %v1531, %v1498
        %v1534 = vmax.f32 %v1532, %v1533
        %v1535 = vrot.slane %v1534, 4
        %v1536 = vmax.f32 %v1534, %v1535
        %v1537 = vrot.slane %v1536, 2
        %v1538 = vmax.f32 %v1536, %v1537
        %v1539 = vrot.slane %v1538, 1
        %v1540 = vmax.f32 %v1538, %v1539
        %v1541 = vld [vmem:[%s369 + $0x2] sm:$0x3]
        %v1544 = vcombine.low %v1519, %v1540
        %v1546 = vunpack.c.l.s4 1966171168
        %v1547 = vunpack.c.0.s8 %v1546
        %v1548 = vlaneseq
        %v1549 = vshrl.u32 %v1548, 7
        %v1550 = vsub.s32 %v1547, %v1549
        %v1551 = vrot.slane %v1544, %v1550
        %v1553 = vunpack.c.l.s4 1966171168
        %v1554 = vunpack.c.0.s8 %v1553
        %v1555 = vlaneseq
        %v1556 = vshrl.u32 %v1555, 7
        %v1557 = vsub.s32 %v1554, %v1556
        %v1558 = vrot.slane %v1551, %v1557
        %v1560 = vmax.f32 %v1541, %v1558
        %1561 = vst.msk [vmem:[%s369 + $0x2] sm:$0x3] %vm1256, %v1560
        %v1562 = vld [vmem:[#allocation2 + $0x10] sm:$0xff]
        %v1563 = vld [vmem:[#allocation2 + $0x30] sm:$0xff]
        %v1564 = vld [vmem:[#allocation2 + $0x50] sm:$0xff]
        %v1565 = vld [vmem:[#allocation2 + $0x70] sm:$0xff]
        %v1566 = vld [vmem:[#allocation2 + $0x90] sm:$0xff]
        %v1567 = vld [vmem:[#allocation2 + $0xb0] sm:$0xff]
        %v1568 = vld [vmem:[#allocation2 + $0xd0] sm:$0xff]
        %v1569 = vld [vmem:[#allocation2 + $0xf0] sm:$0xff]
        %v1570 = vld [vmem:[#allocation2 + $0x110] sm:$0xff]
        %v1571 = vld [vmem:[#allocation2 + $0x130] sm:$0xff]
        %v1572 = vld [vmem:[#allocation2 + $0x150] sm:$0xff]
        %v1573 = vld [vmem:[#allocation2 + $0x170] sm:$0xff]
        %v1574 = vld [vmem:[#allocation2 + $0x190] sm:$0xff]
        %v1575 = vld [vmem:[#allocation2 + $0x1b0] sm:$0xff]
        %v1576 = vld [vmem:[#allocation2 + $0x1d0] sm:$0xff]
        %v1577 = vld [vmem:[#allocation2 + $0x1f0] sm:$0xff]
        %v1594 = vunpack.c.l.b16 %v1562
        %v1595 = vunpack.c.h.b16 %v1562
        %v1596 = vunpack.c.l.b16 %v1563
        %v1597 = vunpack.c.h.b16 %v1563
        %v1598 = vunpack.c.l.b16 %v1564
        %v1599 = vunpack.c.h.b16 %v1564
        %v1600 = vunpack.c.l.b16 %v1565
        %v1601 = vunpack.c.h.b16 %v1565
        %v1602 = vunpack.c.l.b16 %v1566
        %v1603 = vunpack.c.h.b16 %v1566
        %v1604 = vunpack.c.l.b16 %v1567
        %v1605 = vunpack.c.h.b16 %v1567
        %v1606 = vunpack.c.l.b16 %v1568
        %v1607 = vunpack.c.h.b16 %v1568
        %v1608 = vunpack.c.l.b16 %v1569
        %v1609 = vunpack.c.h.b16 %v1569
        %v1610 = vunpack.c.l.b16 %v1570
        %v1611 = vunpack.c.h.b16 %v1570
        %v1612 = vunpack.c.l.b16 %v1571
        %v1613 = vunpack.c.h.b16 %v1571
        %v1614 = vunpack.c.l.b16 %v1572
        %v1615 = vunpack.c.h.b16 %v1572
        %v1616 = vunpack.c.l.b16 %v1573
        %v1617 = vunpack.c.h.b16 %v1573
        %v1618 = vunpack.c.l.b16 %v1574
        %v1619 = vunpack.c.h.b16 %v1574
        %v1620 = vunpack.c.l.b16 %v1575
        %v1621 = vunpack.c.h.b16 %v1575
        %v1622 = vunpack.c.l.b16 %v1576
        %v1623 = vunpack.c.h.b16 %v1576
        %v1624 = vunpack.c.l.b16 %v1577
        %v1625 = vunpack.c.h.b16 %v1577
        %v1626 = vpack.c.b16 %v1596, %v1594
        %v1627 = vpack.c.b16 %v1597, %v1595
        %v1628 = vpack.c.b16 %v1600, %v1598
        %v1629 = vpack.c.b16 %v1601, %v1599
        %v1630 = vpack.c.b16 %v1604, %v1602
        %v1631 = vpack.c.b16 %v1605, %v1603
        %v1632 = vpack.c.b16 %v1608, %v1606
        %v1633 = vpack.c.b16 %v1609, %v1607
        %v1634 = vpack.c.b16 %v1612, %v1610
        %v1635 = vpack.c.b16 %v1613, %v1611
        %v1636 = vpack.c.b16 %v1616, %v1614
        %v1637 = vpack.c.b16 %v1617, %v1615
        %v1638 = vpack.c.b16 %v1620, %v1618
        %v1639 = vpack.c.b16 %v1621, %v1619
        %v1640 = vpack.c.b16 %v1624, %v1622
        %v1641 = vpack.c.b16 %v1625, %v1623
        %1658 = vmatprep.subr.bf16.mxu0 %v1627
        %1659 = vmatpush1.bf16.msra.mxu0 %v1626
        %1660 = vmatprep.subr.bf16.mxu0 %v1629
        %1661 = vmatpush1.bf16.msra.mxu0 %v1628
        %1662 = vmatprep.subr.bf16.mxu0 %v1631
        %1663 = vmatpush1.bf16.msra.mxu0 %v1630
        %1664 = vmatprep.subr.bf16.mxu0 %v1633
        %1665 = vmatpush1.bf16.msra.mxu0 %v1632
        %1666 = vmatprep.subr.bf16.mxu0 %v1635
        %1667 = vmatpush1.bf16.msra.mxu0 %v1634
        %1668 = vmatprep.subr.bf16.mxu0 %v1637
        %1669 = vmatpush1.bf16.msra.mxu0 %v1636
        %1670 = vmatprep.subr.bf16.mxu0 %v1639
        %1671 = vmatpush1.bf16.msra.mxu0 %v1638
        %1672 = vmatprep.subr.bf16.mxu0 %v1641
        %1673 = vmatpush1.bf16.msra.mxu0 %v1640
        %1674 = vmatprep.subr.bf16.mxu0 0
        %1675 = vmatpush1.bf16.msra.mxu0 0
        %1676 = vmatprep.subr.bf16.mxu0 0
        %1677 = vmatpush1.bf16.msra.mxu0 0
        %1678 = vmatprep.subr.bf16.mxu0 0
        %1679 = vmatpush1.bf16.msra.mxu0 0
        %1680 = vmatprep.subr.bf16.mxu0 0
        %1681 = vmatpush1.bf16.msra.mxu0 0
        %1682 = vmatprep.subr.bf16.mxu0 0
        %1683 = vmatpush1.bf16.msra.mxu0 0
        %1684 = vmatprep.subr.bf16.mxu0 0
        %1685 = vmatpush1.bf16.msra.mxu0 0
        %1686 = vmatprep.subr.bf16.mxu0 0
        %1687 = vmatpush1.bf16.msra.mxu0 0
        %1688 = vmatprep.subr.bf16.mxu0 0
        %1689 = vmatpush1.bf16.msra.mxu0 0
        %1690 = vmatprep.mubr.bf16.mxu0 0
        %1691 = vmatmul.mubr.bf16.gmra.mrb[0].mxu0 %v910
        %v1692 = vpop.f32.mrb[0].mxu0
        %v1693 = vadd.f32 0.0, %v1692
        %v1694 = vpop.f32.mrb[0].mxu0
        %v1695 = vadd.f32 0.0, %v1694
        %v1696 = vpop.f32.mrb[0].mxu0
        %v1697 = vadd.f32 0.0, %v1696
        %v1698 = vpop.f32.mrb[0].mxu0
        %v1699 = vadd.f32 0.0, %v1698
        %1700 = vmatprep.mubr.bf16.mxu0 0
        %1701 = vmatmul.mubr.bf16.gmra.mrb[0].mxu0 %v911
        %v1702 = vpop.f32.mrb[0].mxu0
        %v1703 = vadd.f32 0.0, %v1702
        %v1704 = vpop.f32.mrb[0].mxu0
        %v1705 = vadd.f32 0.0, %v1704
        %v1706 = vpop.f32.mrb[0].mxu0
        %v1707 = vadd.f32 0.0, %v1706
        %v1708 = vpop.f32.mrb[0].mxu0
        %v1709 = vadd.f32 0.0, %v1708
        %1710 = vmatprep.mubr.bf16.mxu0 0
        %1711 = vmatmul.mubr.bf16.gmra.mrb[0].mxu0 %v912
        %v1712 = vpop.f32.mrb[0].mxu0
        %v1713 = vadd.f32 0.0, %v1712
        %v1714 = vpop.f32.mrb[0].mxu0
        %v1715 = vadd.f32 0.0, %v1714
        %v1716 = vpop.f32.mrb[0].mxu0
        %v1717 = vadd.f32 0.0, %v1716
        %v1718 = vpop.f32.mrb[0].mxu0
        %v1719 = vadd.f32 0.0, %v1718
        %1720 = vmatprep.mubr.bf16.mxu0 0
        %1721 = vmatmul.mubr.bf16.gmra.mrb[0].mxu0 %v913
        %v1722 = vpop.f32.mrb[0].mxu0
        %v1723 = vadd.f32 0.0, %v1722
        %v1724 = vpop.f32.mrb[0].mxu0
        %v1725 = vadd.f32 0.0, %v1724
        %v1726 = vpop.f32.mrb[0].mxu0
        %v1727 = vadd.f32 0.0, %v1726
        %v1728 = vpop.f32.mrb[0].mxu0
        %v1729 = vadd.f32 0.0, %v1728
        %1730 = vmatprep.mubr.bf16.mxu0 0
        %1731 = vmatmul.mubr.bf16.gmra.mrb[0].mxu0 %v914
        %v1732 = vpop.f32.mrb[0].mxu0
        %v1733 = vadd.f32 0.0, %v1732
        %v1734 = vpop.f32.mrb[0].mxu0
        %v1735 = vadd.f32 0.0, %v1734
        %v1736 = vpop.f32.mrb[0].mxu0
        %v1737 = vadd.f32 0.0, %v1736
        %v1738 = vpop.f32.mrb[0].mxu0
        %v1739 = vadd.f32 0.0, %v1738
        %1740 = vmatprep.mubr.bf16.mxu0 0
        %1741 = vmatmul.mubr.bf16.gmra.mrb[0].mxu0 %v915
        %v1742 = vpop.f32.mrb[0].mxu0
        %v1743 = vadd.f32 0.0, %v1742
        %v1744 = vpop.f32.mrb[0].mxu0
        %v1745 = vadd.f32 0.0, %v1744
        %v1746 = vpop.f32.mrb[0].mxu0
        %v1747 = vadd.f32 0.0, %v1746
        %v1748 = vpop.f32.mrb[0].mxu0
        %v1749 = vadd.f32 0.0, %v1748
        %1750 = vmatprep.mubr.bf16.mxu0 0
        %1751 = vmatmul.mubr.bf16.gmra.mrb[0].mxu0 %v916
        %v1752 = vpop.f32.mrb[0].mxu0
        %v1753 = vadd.f32 0.0, %v1752
        %v1754 = vpop.f32.mrb[0].mxu0
        %v1755 = vadd.f32 0.0, %v1754
        %v1756 = vpop.f32.mrb[0].mxu0
        %v1757 = vadd.f32 0.0, %v1756
        %v1758 = vpop.f32.mrb[0].mxu0
        %v1759 = vadd.f32 0.0, %v1758
        %1760 = vmatprep.mubr.bf16.mxu0 0
        %1761 = vmatmul.mubr.bf16.gmra.mrb[0].mxu0 %v917
        %v1762 = vpop.f32.mrb[0].mxu0
        %v1763 = vadd.f32 0.0, %v1762
        %v1764 = vpop.f32.mrb[0].mxu0
        %v1765 = vadd.f32 0.0, %v1764
        %v1766 = vpop.f32.mrb[0].mxu0
        %v1767 = vadd.f32 0.0, %v1766
        %v1768 = vpop.f32.mrb[0].mxu0
        %v1769 = vadd.f32 0.0, %v1768
        %1770 = vdwg.mxu0
        %v1771 = vsel %vm1143, %v1693, -inf
        %v1772 = vsel %vm1143, %v1695, -inf
        %v1773 = vsel %vm1144, %v1697, -inf
        %v1774 = vsel %vm1144, %v1699, -inf
        %v1775 = vsel %vm1145, %v1703, -inf
        %v1776 = vsel %vm1145, %v1705, -inf
        %v1777 = vsel %vm1146, %v1707, -inf
        %v1778 = vsel %vm1146, %v1709, -inf
        %v1779 = vsel %vm1147, %v1713, -inf
        %v1780 = vsel %vm1147, %v1715, -inf
        %v1781 = vsel %vm1148, %v1717, -inf
        %v1782 = vsel %vm1148, %v1719, -inf
        %v1783 = vsel %vm1149, %v1723, -inf
        %v1784 = vsel %vm1149, %v1725, -inf
        %v1785 = vsel %vm1150, %v1727, -inf
        %v1786 = vsel %vm1150, %v1729, -inf
        %v1787 = vsel %vm1151, %v1733, -inf
        %v1788 = vsel %vm1151, %v1735, -inf
        %v1789 = vsel %vm1152, %v1737, -inf
        %v1790 = vsel %vm1152, %v1739, -inf
        %v1791 = vsel %vm1153, %v1743, -inf
        %v1792 = vsel %vm1153, %v1745, -inf
        %v1793 = vsel %vm1154, %v1747, -inf
        %v1794 = vsel %vm1154, %v1749, -inf
        %v1795 = vsel %vm1155, %v1753, -inf
        %v1796 = vsel %vm1155, %v1755, -inf
        %v1797 = vsel %vm1156, %v1757, -inf
        %v1798 = vsel %vm1156, %v1759, -inf
        %v1799 = vsel %vm1157, %v1763, -inf
        %v1800 = vsel %vm1157, %v1765, -inf
        %v1801 = vsel %vm1158, %v1767, -inf
        %v1802 = vsel %vm1158, %v1769, -inf
        %v1803 = vmax.f32 %v1771, %v1775
        %v1804 = vmax.f32 %v1773, %v1777
        %v1805 = vmax.f32 %v1803, %v1779
        %v1806 = vmax.f32 %v1804, %v1781
        %v1807 = vmax.f32 %v1805, %v1783
        %v1808 = vmax.f32 %v1806, %v1785
        %v1809 = vmax.f32 %v1807, %v1787
        %v1810 = vmax.f32 %v1808, %v1789
        %v1811 = vmax.f32 %v1809, %v1791
        %v1812 = vmax.f32 %v1810, %v1793
        %v1813 = vmax.f32 %v1811, %v1795
        %v1814 = vmax.f32 %v1812, %v1797
        %v1815 = vmax.f32 %v1813, %v1799
        %v1816 = vmax.f32 %v1814, %v1801
        %v1817 = vmax.f32 %v1815, %v1816
        %v1818 = vrot.slane %v1817, 4
        %v1819 = vmax.f32 %v1817, %v1818
        %v1820 = vrot.slane %v1819, 2
        %v1821 = vmax.f32 %v1819, %v1820
        %v1822 = vrot.slane %v1821, 1
        %v1823 = vmax.f32 %v1821, %v1822
        %v1824 = vmax.f32 %v1772, %v1776
        %v1825 = vmax.f32 %v1774, %v1778
        %v1826 = vmax.f32 %v1824, %v1780
        %v1827 = vmax.f32 %v1825, %v1782
        %v1828 = vmax.f32 %v1826, %v1784
        %v1829 = vmax.f32 %v1827, %v1786
        %v1830 = vmax.f32 %v1828, %v1788
        %v1831 = vmax.f32 %v1829, %v1790
        %v1832 = vmax.f32 %v1830, %v1792
        %v1833 = vmax.f32 %v1831, %v1794
        %v1834 = vmax.f32 %v1832, %v1796
        %v1835 = vmax.f32 %v1833, %v1798
        %v1836 = vmax.f32 %v1834, %v1800
        %v1837 = vmax.f32 %v1835, %v1802
        %v1838 = vmax.f32 %v1836, %v1837
        %v1839 = vrot.slane %v1838, 4
        %v1840 = vmax.f32 %v1838, %v1839
        %v1841 = vrot.slane %v1840, 2
        %v1842 = vmax.f32 %v1840, %v1841
        %v1843 = vrot.slane %v1842, 1
        %v1844 = vmax.f32 %v1842, %v1843
        %v1845 = vld [vmem:[%s369 + $0x4] sm:$0x3]
        %v1848 = vcombine.low %v1823, %v1844
        %v1850 = vunpack.c.l.s4 1966171168
        %v1851 = vunpack.c.0.s8 %v1850
        %v1852 = vlaneseq
        %v1853 = vshrl.u32 %v1852, 7
        %v1854 = vsub.s32 %v1851, %v1853
        %v1855 = vrot.slane %v1848, %v1854
        %v1857 = vunpack.c.l.s4 1966171168
        %v1858 = vunpack.c.0.s8 %v1857
        %v1859 = vlaneseq
        %v1860 = vshrl.u32 %v1859, 7
        %v1861 = vsub.s32 %v1858, %v1860
        %v1862 = vrot.slane %v1855, %v1861
        %v1864 = vmax.f32 %v1845, %v1862
        %1865 = vst.msk [vmem:[%s369 + $0x4] sm:$0x3] %vm1256, %v1864
        %v1866 = vld [vmem:[#allocation2 + $0x18] sm:$0xff]
        %v1867 = vld [vmem:[#allocation2 + $0x38] sm:$0xff]
        %v1868 = vld [vmem:[#allocation2 + $0x58] sm:$0xff]
        %v1869 = vld [vmem:[#allocation2 + $0x78] sm:$0xff]
        %v1870 = vld [vmem:[#allocation2 + $0x98] sm:$0xff]
        %v1871 = vld [vmem:[#allocation2 + $0xb8] sm:$0xff]
        %v1872 = vld [vmem:[#allocation2 + $0xd8] sm:$0xff]
        %v1873 = vld [vmem:[#allocation2 + $0xf8] sm:$0xff]
        %v1874 = vld [vmem:[#allocation2 + $0x118] sm:$0xff]
        %v1875 = vld [vmem:[#allocation2 + $0x138] sm:$0xff]
        %v1876 = vld [vmem:[#allocation2 + $0x158] sm:$0xff]
        %v1877 = vld [vmem:[#allocation2 + $0x178] sm:$0xff]
        %v1878 = vld [vmem:[#allocation2 + $0x198] sm:$0xff]
        %v1879 = vld [vmem:[#allocation2 + $0x1b8] sm:$0xff]
        %v1880 = vld [vmem:[#allocation2 + $0x1d8] sm:$0xff]
        %v1881 = vld [vmem:[#allocation2 + $0x1f8] sm:$0xff]
        %v1898 = vunpack.c.l.b16 %v1866
        %v1899 = vunpack.c.h.b16 %v1866
        %v1900 = vunpack.c.l.b16 %v1867
        %v1901 = vunpack.c.h.b16 %v1867
        %v1902 = vunpack.c.l.b16 %v1868
        %v1903 = vunpack.c.h.b16 %v1868
        %v1904 = vunpack.c.l.b16 %v1869
        %v1905 = vunpack.c.h.b16 %v1869
        %v1906 = vunpack.c.l.b16 %v1870
        %v1907 = vunpack.c.h.b16 %v1870
        %v1908 = vunpack.c.l.b16 %v1871
        %v1909 = vunpack.c.h.b16 %v1871
        %v1910 = vunpack.c.l.b16 %v1872
        %v1911 = vunpack.c.h.b16 %v1872
        %v1912 = vunpack.c.l.b16 %v1873
        %v1913 = vunpack.c.h.b16 %v1873
        %v1914 = vunpack.c.l.b16 %v1874
        %v1915 = vunpack.c.h.b16 %v1874
        %v1916 = vunpack.c.l.b16 %v1875
        %v1917 = vunpack.c.h.b16 %v1875
        %v1918 = vunpack.c.l.b16 %v1876
        %v1919 = vunpack.c.h.b16 %v1876
        %v1920 = vunpack.c.l.b16 %v1877
        %v1921 = vunpack.c.h.b16 %v1877
        %v1922 = vunpack.c.l.b16 %v1878
        %v1923 = vunpack.c.h.b16 %v1878
        %v1924 = vunpack.c.l.b16 %v1879
        %v1925 = vunpack.c.h.b16 %v1879
        %v1926 = vunpack.c.l.b16 %v1880
        %v1927 = vunpack.c.h.b16 %v1880
        %v1928 = vunpack.c.l.b16 %v1881
        %v1929 = vunpack.c.h.b16 %v1881
        %v1930 = vpack.c.b16 %v1900, %v1898
        %v1931 = vpack.c.b16 %v1901, %v1899
        %v1932 = vpack.c.b16 %v1904, %v1902
        %v1933 = vpack.c.b16 %v1905, %v1903
        %v1934 = vpack.c.b16 %v1908, %v1906
        %v1935 = vpack.c.b16 %v1909, %v1907
        %v1936 = vpack.c.b16 %v1912, %v1910
        %v1937 = vpack.c.b16 %v1913, %v1911
        %v1938 = vpack.c.b16 %v1916, %v1914
        %v1939 = vpack.c.b16 %v1917, %v1915
        %v1940 = vpack.c.b16 %v1920, %v1918
        %v1941 = vpack.c.b16 %v1921, %v1919
        %v1942 = vpack.c.b16 %v1924, %v1922
        %v1943 = vpack.c.b16 %v1925, %v1923
        %v1944 = vpack.c.b16 %v1928, %v1926
        %v1945 = vpack.c.b16 %v1929, %v1927
        %1962 = vmatprep.subr.bf16.mxu0 %v1931
        %1963 = vmatpush1.bf16.msra.mxu0 %v1930
        %1964 = vmatprep.subr.bf16.mxu0 %v1933
        %1965 = vmatpush1.bf16.msra.mxu0 %v1932
        %1966 = vmatprep.subr.bf16.mxu0 %v1935
        %1967 = vmatpush1.bf16.msra.mxu0 %v1934
        %1968 = vmatprep.subr.bf16.mxu0 %v1937
        %1969 = vmatpush1.bf16.msra.mxu0 %v1936
        %1970 = vmatprep.subr.bf16.mxu0 %v1939
        %1971 = vmatpush1.bf16.msra.mxu0 %v1938
        %1972 = vmatprep.subr.bf16.mxu0 %v1941
        %1973 = vmatpush1.bf16.msra.mxu0 %v1940
        %1974 = vmatprep.subr.bf16.mxu0 %v1943
        %1975 = vmatpush1.bf16.msra.mxu0 %v1942
        %1976 = vmatprep.subr.bf16.mxu0 %v1945
        %1977 = vmatpush1.bf16.msra.mxu0 %v1944
        %1978 = vmatprep.subr.bf16.mxu0 0
        %1979 = vmatpush1.bf16.msra.mxu0 0
        %1980 = vmatprep.subr.bf16.mxu0 0
        %1981 = vmatpush1.bf16.msra.mxu0 0
        %1982 = vmatprep.subr.bf16.mxu0 0
        %1983 = vmatpush1.bf16.msra.mxu0 0
        %1984 = vmatprep.subr.bf16.mxu0 0
        %1985 = vmatpush1.bf16.msra.mxu0 0
        %1986 = vmatprep.subr.bf16.mxu0 0
        %1987 = vmatpush1.bf16.msra.mxu0 0
        %1988 = vmatprep.subr.bf16.mxu0 0
        %1989 = vmatpush1.bf16.msra.mxu0 0
        %1990 = vmatprep.subr.bf16.mxu0 0
        %1991 = vmatpush1.bf16.msra.mxu0 0
        %1992 = vmatprep.subr.bf16.mxu0 0
        %1993 = vmatpush1.bf16.msra.mxu0 0
        %1994 = vmatprep.mubr.bf16.mxu0 0
        %1995 = vmatmul.mubr.bf16.gmra.mrb[0].mxu0 %v910
        %v1996 = vpop.f32.mrb[0].mxu0
        %v1997 = vadd.f32 0.0, %v1996
        %v1998 = vpop.f32.mrb[0].mxu0
        %v1999 = vadd.f32 0.0, %v1998
        %v2000 = vpop.f32.mrb[0].mxu0
        %v2001 = vadd.f32 0.0, %v2000
        %v2002 = vpop.f32.mrb[0].mxu0
        %v2003 = vadd.f32 0.0, %v2002
        %2004 = vmatprep.mubr.bf16.mxu0 0
        %2005 = vmatmul.mubr.bf16.gmra.mrb[0].mxu0 %v911
        %v2006 = vpop.f32.mrb[0].mxu0
        %v2007 = vadd.f32 0.0, %v2006
        %v2008 = vpop.f32.mrb[0].mxu0
        %v2009 = vadd.f32 0.0, %v2008
        %v2010 = vpop.f32.mrb[0].mxu0
        %v2011 = vadd.f32 0.0, %v2010
        %v2012 = vpop.f32.mrb[0].mxu0
        %v2013 = vadd.f32 0.0, %v2012
        %2014 = vmatprep.mubr.bf16.mxu0 0
        %2015 = vmatmul.mubr.bf16.gmra.mrb[0].mxu0 %v912
        %v2016 = vpop.f32.mrb[0].mxu0
        %v2017 = vadd.f32 0.0, %v2016
        %v2018 = vpop.f32.mrb[0].mxu0
        %v2019 = vadd.f32 0.0, %v2018
        %v2020 = vpop.f32.mrb[0].mxu0
        %v2021 = vadd.f32 0.0, %v2020
        %v2022 = vpop.f32.mrb[0].mxu0
        %v2023 = vadd.f32 0.0, %v2022
        %2024 = vmatprep.mubr.bf16.mxu0 0
        %2025 = vmatmul.mubr.bf16.gmra.mrb[0].mxu0 %v913
        %v2026 = vpop.f32.mrb[0].mxu0
        %v2027 = vadd.f32 0.0, %v2026
        %v2028 = vpop.f32.mrb[0].mxu0
        %v2029 = vadd.f32 0.0, %v2028
        %v2030 = vpop.f32.mrb[0].mxu0
        %v2031 = vadd.f32 0.0, %v2030
        %v2032 = vpop.f32.mrb[0].mxu0
        %v2033 = vadd.f32 0.0, %v2032
        %2034 = vmatprep.mubr.bf16.mxu0 0
        %2035 = vmatmul.mubr.bf16.gmra.mrb[0].mxu0 %v914
        %v2036 = vpop.f32.mrb[0].mxu0
        %v2037 = vadd.f32 0.0, %v2036
        %v2038 = vpop.f32.mrb[0].mxu0
        %v2039 = vadd.f32 0.0, %v2038
        %v2040 = vpop.f32.mrb[0].mxu0
        %v2041 = vadd.f32 0.0, %v2040
        %v2042 = vpop.f32.mrb[0].mxu0
        %v2043 = vadd.f32 0.0, %v2042
        %2044 = vmatprep.mubr.bf16.mxu0 0
        %2045 = vmatmul.mubr.bf16.gmra.mrb[0].mxu0 %v915
        %v2046 = vpop.f32.mrb[0].mxu0
        %v2047 = vadd.f32 0.0, %v2046
        %v2048 = vpop.f32.mrb[0].mxu0
        %v2049 = vadd.f32 0.0, %v2048
        %v2050 = vpop.f32.mrb[0].mxu0
        %v2051 = vadd.f32 0.0, %v2050
        %v2052 = vpop.f32.mrb[0].mxu0
        %v2053 = vadd.f32 0.0, %v2052
        %2054 = vmatprep.mubr.bf16.mxu0 0
        %2055 = vmatmul.mubr.bf16.gmra.mrb[0].mxu0 %v916
        %v2056 = vpop.f32.mrb[0].mxu0
        %v2057 = vadd.f32 0.0, %v2056
        %v2058 = vpop.f32.mrb[0].mxu0
        %v2059 = vadd.f32 0.0, %v2058
        %v2060 = vpop.f32.mrb[0].mxu0
        %v2061 = vadd.f32 0.0, %v2060
        %v2062 = vpop.f32.mrb[0].mxu0
        %v2063 = vadd.f32 0.0, %v2062
        %2064 = vmatprep.mubr.bf16.mxu0 0
        %2065 = vmatmul.mubr.bf16.gmra.mrb[0].mxu0 %v917
        %v2066 = vpop.f32.mrb[0].mxu0
        %v2067 = vadd.f32 0.0, %v2066
        %v2068 = vpop.f32.mrb[0].mxu0
        %v2069 = vadd.f32 0.0, %v2068
        %v2070 = vpop.f32.mrb[0].mxu0
        %v2071 = vadd.f32 0.0, %v2070
        %v2072 = vpop.f32.mrb[0].mxu0
        %v2073 = vadd.f32 0.0, %v2072
        %2074 = vdwg.mxu0
        %v2075 = vsel %vm1143, %v1997, -inf
        %v2076 = vsel %vm1143, %v1999, -inf
        %v2077 = vsel %vm1144, %v2001, -inf
        %v2078 = vsel %vm1144, %v2003, -inf
        %v2079 = vsel %vm1145, %v2007, -inf
        %v2080 = vsel %vm1145, %v2009, -inf
        %v2081 = vsel %vm1146, %v2011, -inf
        %v2082 = vsel %vm1146, %v2013, -inf
        %v2083 = vsel %vm1147, %v2017, -inf
        %v2084 = vsel %vm1147, %v2019, -inf
        %v2085 = vsel %vm1148, %v2021, -inf
        %v2086 = vsel %vm1148, %v2023, -inf
        %v2087 = vsel %vm1149, %v2027, -inf
        %v2088 = vsel %vm1149, %v2029, -inf
        %v2089 = vsel %vm1150, %v2031, -inf
        %v2090 = vsel %vm1150, %v2033, -inf
        %v2091 = vsel %vm1151, %v2037, -inf
        %v2092 = vsel %vm1151, %v2039, -inf
        %v2093 = vsel %vm1152, %v2041, -inf
        %v2094 = vsel %vm1152, %v2043, -inf
        %v2095 = vsel %vm1153, %v2047, -inf
        %v2096 = vsel %vm1153, %v2049, -inf
        %v2097 = vsel %vm1154, %v2051, -inf
        %v2098 = vsel %vm1154, %v2053, -inf
        %v2099 = vsel %vm1155, %v2057, -inf
        %v2100 = vsel %vm1155, %v2059, -inf
        %v2101 = vsel %vm1156, %v2061, -inf
        %v2102 = vsel %vm1156, %v2063, -inf
        %v2103 = vsel %vm1157, %v2067, -inf
        %v2104 = vsel %vm1157, %v2069, -inf
        %v2105 = vsel %vm1158, %v2071, -inf
        %v2106 = vsel %vm1158, %v2073, -inf
        %v2107 = vmax.f32 %v2075, %v2079
        %v2108 = vmax.f32 %v2077, %v2081
        %v2109 = vmax.f32 %v2107, %v2083
        %v2110 = vmax.f32 %v2108, %v2085
        %v2111 = vmax.f32 %v2109, %v2087
        %v2112 = vmax.f32 %v2110, %v2089
        %v2113 = vmax.f32 %v2111, %v2091
        %v2114 = vmax.f32 %v2112, %v2093
        %v2115 = vmax.f32 %v2113, %v2095
        %v2116 = vmax.f32 %v2114, %v2097
        %v2117 = vmax.f32 %v2115, %v2099
        %v2118 = vmax.f32 %v2116, %v2101
        %v2119 = vmax.f32 %v2117, %v2103
        %v2120 = vmax.f32 %v2118, %v2105
        %v2121 = vmax.f32 %v2119, %v2120
        %v2122 = vrot.slane %v2121, 4
        %v2123 = vmax.f32 %v2121, %v2122
        %v2124 = vrot.slane %v2123, 2
        %v2125 = vmax.f32 %v2123, %v2124
        %v2126 = vrot.slane %v2125, 1
        %v2127 = vmax.f32 %v2125, %v2126
        %v2128 = vmax.f32 %v2076, %v2080
        %v2129 = vmax.f32 %v2078, %v2082
        %v2130 = vmax.f32 %v2128, %v2084
        %v2131 = vmax.f32 %v2129, %v2086
        %v2132 = vmax.f32 %v2130, %v2088
        %v2133 = vmax.f32 %v2131, %v2090
        %v2134 = vmax.f32 %v2132, %v2092
        %v2135 = vmax.f32 %v2133, %v2094
        %v2136 = vmax.f32 %v2134, %v2096
        %v2137 = vmax.f32 %v2135, %v2098
        %v2138 = vmax.f32 %v2136, %v2100
        %v2139 = vmax.f32 %v2137, %v2102
        %v2140 = vmax.f32 %v2138, %v2104
        %v2141 = vmax.f32 %v2139, %v2106
        %v2142 = vmax.f32 %v2140, %v2141
        %v2143 = vrot.slane %v2142, 4
        %v2144 = vmax.f32 %v2142, %v2143
        %v2145 = vrot.slane %v2144, 2
        %v2146 = vmax.f32 %v2144, %v2145
        %v2147 = vrot.slane %v2146, 1
        %v2148 = vmax.f32 %v2146, %v2147
        %v2149 = vld [vmem:[%s369 + $0x6] sm:$0x3]
        %v2152 = vcombine.low %v2127, %v2148
        %v2154 = vunpack.c.l.s4 1966171168
        %v2155 = vunpack.c.0.s8 %v2154
        %v2156 = vlaneseq
        %v2157 = vshrl.u32 %v2156, 7
        %v2158 = vsub.s32 %v2155, %v2157
        %v2159 = vrot.slane %v2152, %v2158
        %v2161 = vunpack.c.l.s4 1966171168
        %v2162 = vunpack.c.0.s8 %v2161
        %v2163 = vlaneseq
        %v2164 = vshrl.u32 %v2163, 7
        %v2165 = vsub.s32 %v2162, %v2164
        %v2166 = vrot.slane %v2159, %v2165
        %v2168 = vmax.f32 %v2149, %v2166
        %2169 = vst.msk [vmem:[%s369 + $0x6] sm:$0x3] %vm1256, %v2168
        // Predicated region
        $region65: #{tpu_custom_call.1} parent=51 // pred_check
          %p2170 = pneg %p384
        $region66: #{tpu_custom_call.1} parent=51 // pred_check_branch
          %2172 = sbr.rel (%p2170) target = $region68
        $region67: #{tpu_custom_call.1} parent=51 // pred_region
          %v2173 = vld [vmem:[%s369] sm:$0xff]
          %v2174 = vld [vmem:[%s6] sm:$0xff]
          %v2175 = vadd.f32 %v2173, %v2174
          %2176 = vst [vmem:[%s369] sm:$0xff] %v2175
        $region68: #{tpu_custom_call.1} parent=51 // pred_fallthru
          _
        %s2177 = sand.u32 %s234, 1
        %s2178 = scalar_lea.sflag [#allocation4], %s2177
        %s2179 = sand.u32 %s234, 1
        %s2180 = smul.addr %s2179, 8
        %s2181 = scalar_lea.vmem [#allocation7], %s2180
        // Predicated region
        $region69: #{tpu_custom_call.1} parent=51 // pred_check
          %p2182 = pneg %p244
        $region70: #{tpu_custom_call.1} parent=51 // pred_check_branch
          %2184 = sbr.rel (%p2182) target = $region72
        $region71: #{tpu_custom_call.1} parent=51 // pred_region
          %s2186 = ssub.s32 128, 128
          %2187 = vsyncadd %s2178, %s2186
          %s2188 = smul.addr %s30, 8
          %s2189 = smul.addr %s29, 16
          %s2190 = sadd.s32 %s2188, %s2189
          %s2191 = smul.addr %s2190, 16
          %s2192 = scalar_lea.hbm %s8, %s2191
          %s2194 = sshll.u32 %s2181, 4
          %s2195 = int_to_ptr.vmem [resolvable:$true] %s2194
          %2197 = dma.vmem_to_hbm [thread:$0]  %s2195, 128, %s2192, %s2178
        $region72: #{tpu_custom_call.1} parent=51 // pred_fallthru
          _
      $region52: #{tpu_custom_call.1} parent=5 // pred_fallthru
        _
      %p2198 = scmp.le.s32.totalorder 2, %s19
      // Predicated region
      $region73: #{tpu_custom_call.1} parent=5 // pred_check
        %p2199 = pneg %p2198
      $region74: #{tpu_custom_call.1} parent=5 // pred_check_branch
        %2201 = sbr.rel (%p2199) target = $region76
      $region75: #{tpu_custom_call.1} parent=5 // pred_region
        %s2202 = ssub.s32 %s19, 2
        // Predicated region
        $region77: #{tpu_custom_call.1} parent=75 // pred_check
          %p2203 = pneg %p250
        $region78: #{tpu_custom_call.1} parent=75 // pred_check_branch
          %2205 = sbr.rel (%p2203) target = $region80
        $region79: #{tpu_custom_call.1} parent=75 // pred_region
          %s2206 = sand.u32 %s235, 1
          %s2207 = scalar_lea.sflag [#allocation4], %s2206
          %s2208 = sand.u32 %s235, 1
          %s2209 = smul.addr %s2208, 8
          %s2210 = scalar_lea.vmem [#allocation7], %s2209
          %2211 = dma.done %s2207, 128
        $region80: #{tpu_custom_call.1} parent=75 // pred_fallthru
          _
      $region76: #{tpu_custom_call.1} parent=5 // pred_fallthru
        _
    $region6: #{tpu_custom_call.1} parent=1 // loop_footer
      %s23 = sadd.s32 1, %s19
    $region7: #{tpu_custom_call.1} parent=1 // loop_footer_branch
      %18 = sbr.rel target = $region3
    $region8: #{tpu_custom_call.1} parent=1 // loop_exit
      _
    %2212 = vsyncpa [#allocation3], 1
    %s2213 = scalar_lea.sflag [#allocation3], 1
    %2214 = vsyncpa %s2213, 1
    %2215 = vsyncpa [#allocation4], 1
    %s2216 = scalar_lea.sflag [#allocation4], 1
    %2217 = vsyncpa %s2216, 1
    %2218 = vsyncpa [#allocation5], 1
    %s2219 = scalar_lea.sflag [#allocation5], 1
    %2220 = vsyncpa %s2219, 1

</llo_original>
